<compile_context>
chip_gen: v7x
topology: tpu7x:2x2x1
jax: 0.10.0
libtpu: 0.0.40
codegen_flags: <defaults>
</compile_context>

<pallas_src>
import functools

import jax
import jax.numpy as jnp
from jax.experimental import pallas as pl
from jax.experimental.pallas import tpu as pltpu


def _round_up(x: int, m: int) -> int:
    return ((x + m - 1) // m) * m


def _cdiv(a: int, b: int) -> int:
    return (a + b - 1) // b


def _rnn_chunk_kernel(x_ref, h0_ref, wx_ref, wh_ref, b_ref, y_ref, hout_ref, h_sc,
                      *, s_chunk, seq_len, num_chains, unroll):
    """One (batch block, sequence chunk): h_t = tanh(x_t @ Wx + h_{t-1} @ Wh + b).

    x_ref   : (S_chunk, B_blk, I)     storage/compute dtype (time-major)
    h0_ref  : (B_blk, H_pad)   f32    read only at the first chunk
    wx_ref  : (I, H_pad)       compute dtype (resident)
    wh_ref  : (H_pad, H_pad)   compute dtype (resident)
    b_ref   : (1, H_pad)       f32
    y_ref   : (S_chunk, B_blk, H_pad) f32 (lane-dense, time-major)
    hout_ref: (B_blk, H_pad)   f32
    h_sc    : (B_blk, H_pad)   f32 VMEM scratch carrying h across chunks
    """
    s_id = pl.program_id(1)

    @pl.when(s_id == 0)
    def _():
        h_sc[...] = h0_ref[...]

    wx = wx_ref[...]
    wh = wh_ref[...]
    bias = b_ref[...]                      # (1, H_pad), broadcasts over rows
    cd = wh.dtype

    b_blk = h_sc.shape[0]
    rows = b_blk // num_chains
    t0 = s_id * s_chunk
    needs_guard = (seq_len % s_chunk) != 0   # static: only the last chunk is partial

    hs0 = tuple(h_sc[c * rows:(c + 1) * rows, :] for c in range(num_chains))

    def step(t, hs):
        xt = x_ref[t].astype(cd)           # (B_blk, I)
        new_hs = []
        for c in range(num_chains):        # independent sub-chains -> ILP on the
            lo = c * rows                  # serial matmul->add->tanh critical path
            pre = (jnp.dot(xt[lo:lo + rows], wx, preferred_element_type=jnp.float32)
                   + jnp.dot(hs[c].astype(cd), wh, preferred_element_type=jnp.float32)
                   + bias)
            h_new = jnp.tanh(pre)
            y_ref[t, lo:lo + rows, :] = h_new.astype(y_ref.dtype)
            if needs_guard:
                # Padded timesteps (t0 + t >= S) must not advance the carried state.
                h_new = jnp.where(t0 + t < seq_len, h_new, hs[c])
            new_hs.append(h_new)
        return tuple(new_hs)

    hs_fin = jax.lax.fori_loop(0, s_chunk, step, hs0, unroll=unroll)

    for c in range(num_chains):
        lo = c * rows
        h_sc[lo:lo + rows, :] = hs_fin[c]
        hout_ref[lo:lo + rows, :] = hs_fin[c]
    # TODO(synk): nn.Dropout is identity in eval mode; training-mode dropout would
    # use pltpu.prng_seed / pltpu.stateful_bernoulli on h_new here.


def rnn_cell_forward(x, h, w, b, *, compute_dtype=jnp.float32,
                     batch_block=256, seq_chunk=32, time_major_output=False):
    """x: [B,S,I] f32, h: [B,H] f32, w: [H, I+H] (torch Linear layout), b: [H]."""
    B, S, I = x.shape
    H = h.shape[1]

    # Split the torch-layout weight: concat(x, h) @ W.T == x @ Wx + h @ Wh.
    wx = jnp.transpose(w[:, :I])           # (I, H)
    wh = jnp.transpose(w[:, I:])           # (H, H)

    H_pad = _round_up(H, 128)              # lane-dense stores / full MXU lanes

    # ---- per-generation VMEM budget & tile sizing -------------------------------
    try:
        vmem_cap = int(pltpu.get_tpu_info().vmem_capacity_bytes)
    except Exception:
        vmem_cap = 64 << 20                # conservative (v7x-sized) fallback
    budget = min((vmem_cap * 3) // 4, 100 << 20)   # ~48 MiB on v7x, ~96 MiB v5e/v6e

    cd_bytes = jnp.dtype(compute_dtype).itemsize
    i_lane = _round_up(max(I, 1), 128)     # VMEM lane padding of the x buffer

    def vmem_est(s_chunk, b_blk):
        return (2 * s_chunk * b_blk * i_lane * cd_bytes   # x in  (double buffered)
                + 2 * s_chunk * b_blk * H_pad * 4         # y out (double buffered)
                + _round_up(I, 8) * H_pad * cd_bytes      # Wx
                + H_pad * H_pad * cd_bytes                # Wh
                + 8 * H_pad * 4                           # bias
                + 4 * b_blk * H_pad * 4                   # h0 + hout
                + b_blk * H_pad * 4)                      # h scratch

    B8 = _round_up(B, 8)
    if B8 >= 16:
        # >=2 batch blocks so the "parallel" axis can split across v7x's two TCs.
        b_blk = min(batch_block, max(8, _round_up(_cdiv(B8, 2), 8)))
    else:
        b_blk = B8
    s_chunk = max(1, min(S, seq_chunk))

    while vmem_est(s_chunk, b_blk) > budget and s_chunk > 8:
        s_chunk = max(8, s_chunk // 2)
    while vmem_est(s_chunk, b_blk) > budget and b_blk > 8:
        b_blk = max(8, _round_up(b_blk // 2, 8))

    S_pad = _round_up(S, s_chunk)
    B_pad = _round_up(B8, b_blk)
    num_b = B_pad // b_blk
    num_s = S_pad // s_chunk
    num_chains = 2 if b_blk >= 16 else 1
    unroll = min(s_chunk, 8)
    vmem_limit = int(min(budget, max(2 * vmem_est(s_chunk, b_blk), 32 << 20)))

    # ---- operand prep (x is the small tensor now: I vs H_pad lanes) -------------
    x_tm = jnp.transpose(x, (1, 0, 2)).astype(compute_dtype)          # (S, B, I)
    x_tm = jnp.pad(x_tm, ((0, S_pad - S), (0, B_pad - B), (0, 0)))
    h0_p = jnp.pad(h.astype(jnp.float32), ((0, B_pad - B), (0, H_pad - H)))
    wx_p = jnp.pad(wx, ((0, 0), (0, H_pad - H))).astype(compute_dtype)
    wh_p = jnp.pad(wh, ((0, H_pad - H), (0, H_pad - H))).astype(compute_dtype)
    b_p = jnp.pad(b.astype(jnp.float32), (0, H_pad - H)).reshape(1, H_pad)

    kernel = functools.partial(_rnn_chunk_kernel, s_chunk=s_chunk, seq_len=S,
                               num_chains=num_chains, unroll=unroll)

    # NOTE: for very large H the constant-index weight specs could be single
    # buffered via pipeline_mode=pl.Buffered(1); kept at the default here since the
    # saving is tiny at these H and the default is the most robust path.
    grid_spec = pltpu.PrefetchScalarGridSpec(
        num_scalar_prefetch=0,
        grid=(num_b, num_s),                   # (parallel batch, arbitrary sequence)
        in_specs=[
            pl.BlockSpec((s_chunk, b_blk, I), lambda bi, si: (si, bi, 0)),   # x
            pl.BlockSpec((b_blk, H_pad), lambda bi, si: (bi, 0)),            # h0
            pl.BlockSpec((I, H_pad), lambda bi, si: (0, 0)),                 # Wx
            pl.BlockSpec((H_pad, H_pad), lambda bi, si: (0, 0)),             # Wh
            pl.BlockSpec((1, H_pad), lambda bi, si: (0, 0)),                 # bias
        ],
        out_specs=[
            pl.BlockSpec((s_chunk, b_blk, H_pad), lambda bi, si: (si, bi, 0)),  # y
            pl.BlockSpec((b_blk, H_pad), lambda bi, si: (bi, 0)),               # h_out
        ],
        scratch_shapes=[pltpu.VMEM((b_blk, H_pad), jnp.float32)],               # h carry
    )

    y_tm, h_out = pl.pallas_call(
        kernel,
        out_shape=(
            jax.ShapeDtypeStruct((S_pad, B_pad, H_pad), jnp.float32),
            jax.ShapeDtypeStruct((B_pad, H_pad), jnp.float32),
        ),
        grid_spec=grid_spec,
        input_output_aliases={1: 1},        # reuse h0's HBM buffer for the final h
        compiler_params=pltpu.CompilerParams(
            dimension_semantics=("parallel", "arbitrary"),
            vmem_limit_bytes=vmem_limit,
        ),
    )(x_tm, h0_p, wx_p, wh_p, b_p)

    h_last = h_out[:B, :H]
    if time_major_output:
        # Lane-dense time-major layout straight from the kernel; consumer fuses.
        return y_tm[:S, :B, :H], h_last
    # TODO(synk): skip this transpose if the caller can consume time-major output.
    y = jnp.transpose(y_tm[:S, :B, :H], (1, 0, 2))
    return y, h_last


def _reference(x, h, w, b, compute_dtype=jnp.float32):
    """Pure-JAX reference. compute_dtype emulates the kernel's operand rounding
    (math stays in f32), so bf16 mode can be checked with tight tolerances."""
    B, S, I = x.shape

    def rnd(a):
        return a.astype(compute_dtype).astype(jnp.float32)

    wx = rnd(jnp.transpose(w[:, :I]))
    wh = rnd(jnp.transpose(w[:, I:]))
    x32 = rnd(x)
    hh = h.astype(jnp.float32)
    ys = []
    for t in range(S):
        pre = x32[:, t] @ wx + rnd(hh) @ wh + b
        hh = jnp.tanh(pre)
        ys.append(hh)
    return jnp.stack(ys, axis=1), hh


def _make_case(key, B, S, I, H):
    k_x, k_h, k_w, k_b = jax.random.split(key, 4)
    bound = float((I + H) ** -0.5)      # nn.Linear(I+H, H) init bound
    x = jax.random.normal(k_x, (B, S, I), dtype=jnp.float32)
    h0 = jax.random.normal(k_h, (B, H), dtype=jnp.float32)
    w = jax.random.uniform(k_w, (H, I + H), jnp.float32, -bound, bound)
    b = jax.random.uniform(k_b, (H,), jnp.float32, -bound, bound)
    return x, h0, w, b


if __name__ == "__main__":
    root_key = jax.random.PRNGKey(0)
    k1, k2 = jax.random.split(root_key)

    fwd_f32 = jax.jit(functools.partial(rnn_cell_forward, compute_dtype=jnp.float32))
    fwd_bf16 = jax.jit(functools.partial(rnn_cell_forward, compute_dtype=jnp.bfloat16))

    # ---- case 1: small shapes from the module docs (single chunk, single block) --
    B, S, I, H = 2, 8, 16, 32
    x, h0, w, b = _make_case(k1, B, S, I, H)

    y, h_last = fwd_f32(x, h0, w, b)
    jax.block_until_ready((y, h_last))
    y_ref, h_ref = _reference(x, h0, w, b, compute_dtype=jnp.float32)
    assert y.shape == (B, S, H) and h_last.shape == (B, H)
    assert jnp.allclose(y, y_ref, atol=1e-4, rtol=1e-4)
    assert jnp.allclose(h_last, h_ref, atol=1e-4, rtol=1e-4)

    y16, h16 = fwd_bf16(x, h0, w, b)
    jax.block_until_ready((y16, h16))
    y_ref16, h_ref16 = _reference(x, h0, w, b, compute_dtype=jnp.bfloat16)
    assert jnp.allclose(y16, y_ref16, atol=5e-3, rtol=5e-3)
    assert jnp.allclose(h16, h_ref16, atol=5e-3, rtol=5e-3)

    # ---- case 2: exercises multi batch blocks, sequence chunking with a partial
    # last chunk (S % S_chunk != 0), interleaved sub-chains, and B/S/H padding. ----
    B2, S2, I2, H2 = 20, 37, 24, 48
    x2, h02, w2, b2 = _make_case(k2, B2, S2, I2, H2)

    y2, h2 = fwd_f32(x2, h02, w2, b2)
    jax.block_until_ready((y2, h2))
    y2_ref, h2_ref = _reference(x2, h02, w2, b2, compute_dtype=jnp.float32)
    assert y2.shape == (B2, S2, H2) and h2.shape == (B2, H2)
    assert jnp.allclose(y2, y2_ref, atol=1e-3, rtol=1e-3)
    assert jnp.allclose(h2, h2_ref, atol=1e-3, rtol=1e-3)

    print("KERNEL_OK")
</pallas_src>

<mosaic_0001>
module attributes {stable_mosaic.version = 11 : i64} {
  func.func @_rnn_chunk_kernel(%arg0: i32, %arg1: i32, %arg2: memref<8x8x16xf32, #tpu.memory_space<vmem>>, %arg3: memref<8x128xf32, #tpu.memory_space<vmem>>, %arg4: memref<16x128xf32, #tpu.memory_space<vmem>>, %arg5: memref<128x128xf32, #tpu.memory_space<vmem>>, %arg6: memref<1x128xf32, #tpu.memory_space<vmem>>, %arg7: memref<8x8x128xf32, #tpu.memory_space<vmem>>, %arg8: memref<8x128xf32, #tpu.memory_space<vmem>>, %arg9: memref<8x128xf32, #tpu.memory_space<vmem>>) attributes {dimension_semantics = [#tpu.dimension_semantics<parallel>, #tpu.dimension_semantics<arbitrary>], iteration_bounds = array<i64: 1, 1>, scalar_prefetch = 0 : i64, scratch_operands = 1 : i64, tpu.core_type = #tpu.core_type<tc>, window_params = [{transform_indices = @transform_0, window_bounds = array<i64: 8, 8, 16>}, {transform_indices = @transform_1, window_bounds = array<i64: 8, 128>}, {pipeline_mode = #tpu.pipeline_mode<synchronous>, transform_indices = @transform_2, window_bounds = array<i64: 16, 128>}, {pipeline_mode = #tpu.pipeline_mode<synchronous>, transform_indices = @transform_3, window_bounds = array<i64: 128, 128>}, {pipeline_mode = #tpu.pipeline_mode<synchronous>, transform_indices = @transform_4, window_bounds = array<i64: 1, 128>}, {transform_indices = @transform_5, window_bounds = array<i64: 8, 8, 128>}, {transform_indices = @transform_6, window_bounds = array<i64: 8, 128>}]} {
    %c0_i32 = arith.constant 0 : i32
    %0 = arith.cmpi eq, %arg1, %c0_i32 : i32
    %1 = arith.extui %0 : i1 to i32
    %c0_i32_0 = arith.constant 0 : i32
    %2 = arith.cmpi ne, %1, %c0_i32_0 : i32
    scf.if %2 {
      %c0_60 = arith.constant 0 : index
      %c0_61 = arith.constant 0 : index
      %113 = vector.load %arg3[%c0_60, %c0_61] : memref<8x128xf32, #tpu.memory_space<vmem>>, vector<8x128xf32>
      %c0_62 = arith.constant 0 : index
      %c0_63 = arith.constant 0 : index
      %114 = vector.load %arg9[%c0_62, %c0_63] : memref<8x128xf32, #tpu.memory_space<vmem>>, vector<8x128xf32>
      tpu.vector_store %arg9[%c0_62, %c0_63], %113 {strides = array<i32>} : memref<8x128xf32, #tpu.memory_space<vmem>>, vector<8x128xf32>,
    } else {
    }
    %c0 = arith.constant 0 : index
    %c0_1 = arith.constant 0 : index
    %3 = vector.load %arg4[%c0, %c0_1] : memref<16x128xf32, #tpu.memory_space<vmem>>, vector<16x128xf32>
    %c0_2 = arith.constant 0 : index
    %c0_3 = arith.constant 0 : index
    %4 = vector.load %arg5[%c0_2, %c0_3] : memref<128x128xf32, #tpu.memory_space<vmem>>, vector<128x128xf32>
    %c0_4 = arith.constant 0 : index
    %c0_5 = arith.constant 0 : index
    %5 = vector.load %arg6[%c0_4, %c0_5] : memref<1x128xf32, #tpu.memory_space<vmem>>, vector<1x128xf32>
    %c0_6 = arith.constant 0 : index
    %c0_7 = arith.constant 0 : index
    %6 = vector.load %arg9[%c0_6, %c0_7] : memref<8x128xf32, #tpu.memory_space<vmem>>, vector<8x128xf32>
    %c0_i32_8 = arith.constant 0 : i32
    %7 = arith.index_cast %c0_i32_8 : i32 to index
    %c0_9 = arith.constant 0 : index
    %c0_10 = arith.constant 0 : index
    %8 = vector.load %arg2[%7, %c0_9, %c0_10] : memref<8x8x16xf32, #tpu.memory_space<vmem>>, vector<1x8x16xf32>
    %9 = vector.shape_cast %8 : vector<1x8x16xf32> to vector<8x16xf32>
    %cst = arith.constant dense<0.000000e+00> : vector<8x128xf32>
    %10 = tpu.matmul %9, %3, %cst {dimension_numbers = #tpu.dot_dimension_numbers<[1], [0], [0], [1], [0, 0, 1, 1], [], []>} : vector<8x16xf32>, vector<16x128xf32>, vector<8x128xf32> -> vector<8x128xf32>
    %cst_11 = arith.constant dense<0.000000e+00> : vector<8x128xf32>
    %11 = tpu.matmul %6, %4, %cst_11 {dimension_numbers = #tpu.dot_dimension_numbers<[1], [0], [0], [1], [0, 0, 1, 1], [], []>} : vector<8x128xf32>, vector<128x128xf32>, vector<8x128xf32> -> vector<8x128xf32>
    %12 = arith.addf %10, %11 : vector<8x128xf32>
    %13 = vector.broadcast %5 : vector<1x128xf32> to vector<8x128xf32>
    %14 = arith.addf %12, %13 : vector<8x128xf32>
    %15 = math.tanh %14 : vector<8x128xf32>
    %16 = arith.index_cast %c0_i32_8 : i32 to index
    %c0_12 = arith.constant 0 : index
    %c0_13 = arith.constant 0 : index
    %17 = vector.load %arg7[%16, %c0_12, %c0_13] : memref<8x8x128xf32, #tpu.memory_space<vmem>>, vector<1x8x128xf32>
    %18 = vector.shape_cast %17 : vector<1x8x128xf32> to vector<8x128xf32>
    %19 = vector.shape_cast %15 : vector<8x128xf32> to vector<1x8x128xf32>
    tpu.vector_store %arg7[%16, %c0_12, %c0_13], %19 {strides = array<i32>} : memref<8x8x128xf32, #tpu.memory_space<vmem>>, vector<1x8x128xf32>,
    %c1_i32 = arith.constant 1 : i32
    %20 = arith.index_cast %c1_i32 : i32 to index
    %c0_14 = arith.constant 0 : index
    %c0_15 = arith.constant 0 : index
    %21 = vector.load %arg2[%20, %c0_14, %c0_15] : memref<8x8x16xf32, #tpu.memory_space<vmem>>, vector<1x8x16xf32>
    %22 = vector.shape_cast %21 : vector<1x8x16xf32> to vector<8x16xf32>
    %cst_16 = arith.constant dense<0.000000e+00> : vector<8x128xf32>
    %23 = tpu.matmul %22, %3, %cst_16 {dimension_numbers = #tpu.dot_dimension_numbers<[1], [0], [0], [1], [0, 0, 1, 1], [], []>} : vector<8x16xf32>, vector<16x128xf32>, vector<8x128xf32> -> vector<8x128xf32>
    %cst_17 = arith.constant dense<0.000000e+00> : vector<8x128xf32>
    %24 = tpu.matmul %15, %4, %cst_17 {dimension_numbers = #tpu.dot_dimension_numbers<[1], [0], [0], [1], [0, 0, 1, 1], [], []>} : vector<8x128xf32>, vector<128x128xf32>, vector<8x128xf32> -> vector<8x128xf32>
    %25 = arith.addf %23, %24 : vector<8x128xf32>
    %26 = vector.broadcast %5 : vector<1x128xf32> to vector<8x128xf32>
    %27 = arith.addf %25, %26 : vector<8x128xf32>
    %28 = math.tanh %27 : vector<8x128xf32>
    %29 = arith.index_cast %c1_i32 : i32 to index
    %c0_18 = arith.constant 0 : index
    %c0_19 = arith.constant 0 : index
    %30 = vector.load %arg7[%29, %c0_18, %c0_19] : memref<8x8x128xf32, #tpu.memory_space<vmem>>, vector<1x8x128xf32>
    %31 = vector.shape_cast %30 : vector<1x8x128xf32> to vector<8x128xf32>
    %32 = vector.shape_cast %28 : vector<8x128xf32> to vector<1x8x128xf32>
    tpu.vector_store %arg7[%29, %c0_18, %c0_19], %32 {strides = array<i32>} : memref<8x8x128xf32, #tpu.memory_space<vmem>>, vector<1x8x128xf32>,
    %c2_i32 = arith.constant 2 : i32
    %33 = arith.index_cast %c2_i32 : i32 to index
    %c0_20 = arith.constant 0 : index
    %c0_21 = arith.constant 0 : index
    %34 = vector.load %arg2[%33, %c0_20, %c0_21] : memref<8x8x16xf32, #tpu.memory_space<vmem>>, vector<1x8x16xf32>
    %35 = vector.shape_cast %34 : vector<1x8x16xf32> to vector<8x16xf32>
    %cst_22 = arith.constant dense<0.000000e+00> : vector<8x128xf32>
    %36 = tpu.matmul %35, %3, %cst_22 {dimension_numbers = #tpu.dot_dimension_numbers<[1], [0], [0], [1], [0, 0, 1, 1], [], []>} : vector<8x16xf32>, vector<16x128xf32>, vector<8x128xf32> -> vector<8x128xf32>
    %cst_23 = arith.constant dense<0.000000e+00> : vector<8x128xf32>
    %37 = tpu.matmul %28, %4, %cst_23 {dimension_numbers = #tpu.dot_dimension_numbers<[1], [0], [0], [1], [0, 0, 1, 1], [], []>} : vector<8x128xf32>, vector<128x128xf32>, vector<8x128xf32> -> vector<8x128xf32>
    %38 = arith.addf %36, %37 : vector<8x128xf32>
    %39 = vector.broadcast %5 : vector<1x128xf32> to vector<8x128xf32>
    %40 = arith.addf %38, %39 : vector<8x128xf32>
    %41 = math.tanh %40 : vector<8x128xf32>
    %42 = arith.index_cast %c2_i32 : i32 to index
    %c0_24 = arith.constant 0 : index
    %c0_25 = arith.constant 0 : index
    %43 = vector.load %arg7[%42, %c0_24, %c0_25] : memref<8x8x128xf32, #tpu.memory_space<vmem>>, vector<1x8x128xf32>
    %44 = vector.shape_cast %43 : vector<1x8x128xf32> to vector<8x128xf32>
    %45 = vector.shape_cast %41 : vector<8x128xf32> to vector<1x8x128xf32>
    tpu.vector_store %arg7[%42, %c0_24, %c0_25], %45 {strides = array<i32>} : memref<8x8x128xf32, #tpu.memory_space<vmem>>, vector<1x8x128xf32>,
    %c3_i32 = arith.constant 3 : i32
    %46 = arith.index_cast %c3_i32 : i32 to index
    %c0_26 = arith.constant 0 : index
    %c0_27 = arith.constant 0 : index
    %47 = vector.load %arg2[%46, %c0_26, %c0_27] : memref<8x8x16xf32, #tpu.memory_space<vmem>>, vector<1x8x16xf32>
    %48 = vector.shape_cast %47 : vector<1x8x16xf32> to vector<8x16xf32>
    %cst_28 = arith.constant dense<0.000000e+00> : vector<8x128xf32>
    %49 = tpu.matmul %48, %3, %cst_28 {dimension_numbers = #tpu.dot_dimension_numbers<[1], [0], [0], [1], [0, 0, 1, 1], [], []>} : vector<8x16xf32>, vector<16x128xf32>, vector<8x128xf32> -> vector<8x128xf32>
    %cst_29 = arith.constant dense<0.000000e+00> : vector<8x128xf32>
    %50 = tpu.matmul %41, %4, %cst_29 {dimension_numbers = #tpu.dot_dimension_numbers<[1], [0], [0], [1], [0, 0, 1, 1], [], []>} : vector<8x128xf32>, vector<128x128xf32>, vector<8x128xf32> -> vector<8x128xf32>
    %51 = arith.addf %49, %50 : vector<8x128xf32>
    %52 = vector.broadcast %5 : vector<1x128xf32> to vector<8x128xf32>
    %53 = arith.addf %51, %52 : vector<8x128xf32>
    %54 = math.tanh %53 : vector<8x128xf32>
    %55 = arith.index_cast %c3_i32 : i32 to index
    %c0_30 = arith.constant 0 : index
    %c0_31 = arith.constant 0 : index
    %56 = vector.load %arg7[%55, %c0_30, %c0_31] : memref<8x8x128xf32, #tpu.memory_space<vmem>>, vector<1x8x128xf32>
    %57 = vector.shape_cast %56 : vector<1x8x128xf32> to vector<8x128xf32>
    %58 = vector.shape_cast %54 : vector<8x128xf32> to vector<1x8x128xf32>
    tpu.vector_store %arg7[%55, %c0_30, %c0_31], %58 {strides = array<i32>} : memref<8x8x128xf32, #tpu.memory_space<vmem>>, vector<1x8x128xf32>,
    %c4_i32 = arith.constant 4 : i32
    %59 = arith.index_cast %c4_i32 : i32 to index
    %c0_32 = arith.constant 0 : index
    %c0_33 = arith.constant 0 : index
    %60 = vector.load %arg2[%59, %c0_32, %c0_33] : memref<8x8x16xf32, #tpu.memory_space<vmem>>, vector<1x8x16xf32>
    %61 = vector.shape_cast %60 : vector<1x8x16xf32> to vector<8x16xf32>
    %cst_34 = arith.constant dense<0.000000e+00> : vector<8x128xf32>
    %62 = tpu.matmul %61, %3, %cst_34 {dimension_numbers = #tpu.dot_dimension_numbers<[1], [0], [0], [1], [0, 0, 1, 1], [], []>} : vector<8x16xf32>, vector<16x128xf32>, vector<8x128xf32> -> vector<8x128xf32>
    %cst_35 = arith.constant dense<0.000000e+00> : vector<8x128xf32>
    %63 = tpu.matmul %54, %4, %cst_35 {dimension_numbers = #tpu.dot_dimension_numbers<[1], [0], [0], [1], [0, 0, 1, 1], [], []>} : vector<8x128xf32>, vector<128x128xf32>, vector<8x128xf32> -> vector<8x128xf32>
    %64 = arith.addf %62, %63 : vector<8x128xf32>
    %65 = vector.broadcast %5 : vector<1x128xf32> to vector<8x128xf32>
    %66 = arith.addf %64, %65 : vector<8x128xf32>
    %67 = math.tanh %66 : vector<8x128xf32>
    %68 = arith.index_cast %c4_i32 : i32 to index
    %c0_36 = arith.constant 0 : index
    %c0_37 = arith.constant 0 : index
    %69 = vector.load %arg7[%68, %c0_36, %c0_37] : memref<8x8x128xf32, #tpu.memory_space<vmem>>, vector<1x8x128xf32>
    %70 = vector.shape_cast %69 : vector<1x8x128xf32> to vector<8x128xf32>
    %71 = vector.shape_cast %67 : vector<8x128xf32> to vector<1x8x128xf32>
    tpu.vector_store %arg7[%68, %c0_36, %c0_37], %71 {strides = array<i32>} : memref<8x8x128xf32, #tpu.memory_space<vmem>>, vector<1x8x128xf32>,
    %c5_i32 = arith.constant 5 : i32
    %72 = arith.index_cast %c5_i32 : i32 to index
    %c0_38 = arith.constant 0 : index
    %c0_39 = arith.constant 0 : index
    %73 = vector.load %arg2[%72, %c0_38, %c0_39] : memref<8x8x16xf32, #tpu.memory_space<vmem>>, vector<1x8x16xf32>
    %74 = vector.shape_cast %73 : vector<1x8x16xf32> to vector<8x16xf32>
    %cst_40 = arith.constant dense<0.000000e+00> : vector<8x128xf32>
    %75 = tpu.matmul %74, %3, %cst_40 {dimension_numbers = #tpu.dot_dimension_numbers<[1], [0], [0], [1], [0, 0, 1, 1], [], []>} : vector<8x16xf32>, vector<16x128xf32>, vector<8x128xf32> -> vector<8x128xf32>
    %cst_41 = arith.constant dense<0.000000e+00> : vector<8x128xf32>
    %76 = tpu.matmul %67, %4, %cst_41 {dimension_numbers = #tpu.dot_dimension_numbers<[1], [0], [0], [1], [0, 0, 1, 1], [], []>} : vector<8x128xf32>, vector<128x128xf32>, vector<8x128xf32> -> vector<8x128xf32>
    %77 = arith.addf %75, %76 : vector<8x128xf32>
    %78 = vector.broadcast %5 : vector<1x128xf32> to vector<8x128xf32>
    %79 = arith.addf %77, %78 : vector<8x128xf32>
    %80 = math.tanh %79 : vector<8x128xf32>
    %81 = arith.index_cast %c5_i32 : i32 to index
    %c0_42 = arith.constant 0 : index
    %c0_43 = arith.constant 0 : index
    %82 = vector.load %arg7[%81, %c0_42, %c0_43] : memref<8x8x128xf32, #tpu.memory_space<vmem>>, vector<1x8x128xf32>
    %83 = vector.shape_cast %82 : vector<1x8x128xf32> to vector<8x128xf32>
    %84 = vector.shape_cast %80 : vector<8x128xf32> to vector<1x8x128xf32>
    tpu.vector_store %arg7[%81, %c0_42, %c0_43], %84 {strides = array<i32>} : memref<8x8x128xf32, #tpu.memory_space<vmem>>, vector<1x8x128xf32>,
    %c6_i32 = arith.constant 6 : i32
    %85 = arith.index_cast %c6_i32 : i32 to index
    %c0_44 = arith.constant 0 : index
    %c0_45 = arith.constant 0 : index
    %86 = vector.load %arg2[%85, %c0_44, %c0_45] : memref<8x8x16xf32, #tpu.memory_space<vmem>>, vector<1x8x16xf32>
    %87 = vector.shape_cast %86 : vector<1x8x16xf32> to vector<8x16xf32>
    %cst_46 = arith.constant dense<0.000000e+00> : vector<8x128xf32>
    %88 = tpu.matmul %87, %3, %cst_46 {dimension_numbers = #tpu.dot_dimension_numbers<[1], [0], [0], [1], [0, 0, 1, 1], [], []>} : vector<8x16xf32>, vector<16x128xf32>, vector<8x128xf32> -> vector<8x128xf32>
    %cst_47 = arith.constant dense<0.000000e+00> : vector<8x128xf32>
    %89 = tpu.matmul %80, %4, %cst_47 {dimension_numbers = #tpu.dot_dimension_numbers<[1], [0], [0], [1], [0, 0, 1, 1], [], []>} : vector<8x128xf32>, vector<128x128xf32>, vector<8x128xf32> -> vector<8x128xf32>
    %90 = arith.addf %88, %89 : vector<8x128xf32>
    %91 = vector.broadcast %5 : vector<1x128xf32> to vector<8x128xf32>
    %92 = arith.addf %90, %91 : vector<8x128xf32>
    %93 = math.tanh %92 : vector<8x128xf32>
    %94 = arith.index_cast %c6_i32 : i32 to index
    %c0_48 = arith.constant 0 : index
    %c0_49 = arith.constant 0 : index
    %95 = vector.load %arg7[%94, %c0_48, %c0_49] : memref<8x8x128xf32, #tpu.memory_space<vmem>>, vector<1x8x128xf32>
    %96 = vector.shape_cast %95 : vector<1x8x128xf32> to vector<8x128xf32>
    %97 = vector.shape_cast %93 : vector<8x128xf32> to vector<1x8x128xf32>
    tpu.vector_store %arg7[%94, %c0_48, %c0_49], %97 {strides = array<i32>} : memref<8x8x128xf32, #tpu.memory_space<vmem>>, vector<1x8x128xf32>,
    %c7_i32 = arith.constant 7 : i32
    %98 = arith.index_cast %c7_i32 : i32 to index
    %c0_50 = arith.constant 0 : index
    %c0_51 = arith.constant 0 : index
    %99 = vector.load %arg2[%98, %c0_50, %c0_51] : memref<8x8x16xf32, #tpu.memory_space<vmem>>, vector<1x8x16xf32>
    %100 = vector.shape_cast %99 : vector<1x8x16xf32> to vector<8x16xf32>
    %cst_52 = arith.constant dense<0.000000e+00> : vector<8x128xf32>
    %101 = tpu.matmul %100, %3, %cst_52 {dimension_numbers = #tpu.dot_dimension_numbers<[1], [0], [0], [1], [0, 0, 1, 1], [], []>} : vector<8x16xf32>, vector<16x128xf32>, vector<8x128xf32> -> vector<8x128xf32>
    %cst_53 = arith.constant dense<0.000000e+00> : vector<8x128xf32>
    %102 = tpu.matmul %93, %4, %cst_53 {dimension_numbers = #tpu.dot_dimension_numbers<[1], [0], [0], [1], [0, 0, 1, 1], [], []>} : vector<8x128xf32>, vector<128x128xf32>, vector<8x128xf32> -> vector<8x128xf32>
    %103 = arith.addf %101, %102 : vector<8x128xf32>
    %104 = vector.broadcast %5 : vector<1x128xf32> to vector<8x128xf32>
    %105 = arith.addf %103, %104 : vector<8x128xf32>
    %106 = math.tanh %105 : vector<8x128xf32>
    %107 = arith.index_cast %c7_i32 : i32 to index
    %c0_54 = arith.constant 0 : index
    %c0_55 = arith.constant 0 : index
    %108 = vector.load %arg7[%107, %c0_54, %c0_55] : memref<8x8x128xf32, #tpu.memory_space<vmem>>, vector<1x8x128xf32>
    %109 = vector.shape_cast %108 : vector<1x8x128xf32> to vector<8x128xf32>
    %110 = vector.shape_cast %106 : vector<8x128xf32> to vector<1x8x128xf32>
    tpu.vector_store %arg7[%107, %c0_54, %c0_55], %110 {strides = array<i32>} : memref<8x8x128xf32, #tpu.memory_space<vmem>>, vector<1x8x128xf32>,
    %c8_i32 = arith.constant 8 : i32
    %c0_56 = arith.constant 0 : index
    %c0_57 = arith.constant 0 : index
    %111 = vector.load %arg9[%c0_56, %c0_57] : memref<8x128xf32, #tpu.memory_space<vmem>>, vector<8x128xf32>
    tpu.vector_store %arg9[%c0_56, %c0_57], %106 {strides = array<i32>} : memref<8x128xf32, #tpu.memory_space<vmem>>, vector<8x128xf32>,
    %c0_58 = arith.constant 0 : index
    %c0_59 = arith.constant 0 : index
    %112 = vector.load %arg8[%c0_58, %c0_59] : memref<8x128xf32, #tpu.memory_space<vmem>>, vector<8x128xf32>
    tpu.vector_store %arg8[%c0_58, %c0_59], %106 {strides = array<i32>} : memref<8x128xf32, #tpu.memory_space<vmem>>, vector<8x128xf32>,
    return
  }
  func.func @transform_0(%arg0: i32, %arg1: i32) -> (i32, i32, i32) {
    %c0_i32 = arith.constant 0 : i32
    %c0_i32_0 = arith.constant 0 : i32
    return %arg1, %arg0, %c0_i32 : i32, i32, i32
  }
  func.func @transform_1(%arg0: i32, %arg1: i32) -> (i32, i32) {
    %c0_i32 = arith.constant 0 : i32
    %c0_i32_0 = arith.constant 0 : i32
    return %arg0, %c0_i32 : i32, i32
  }
  func.func @transform_2(%arg0: i32, %arg1: i32) -> (i32, i32) {
    %c0_i32 = arith.constant 0 : i32
    %c0_i32_0 = arith.constant 0 : i32
    %c0_i32_1 = arith.constant 0 : i32
    return %c0_i32, %c0_i32_0 : i32, i32
  }
  func.func @transform_3(%arg0: i32, %arg1: i32) -> (i32, i32) {
    %c0_i32 = arith.constant 0 : i32
    %c0_i32_0 = arith.constant 0 : i32
    %c0_i32_1 = arith.constant 0 : i32
    return %c0_i32, %c0_i32_0 : i32, i32
  }
  func.func @transform_4(%arg0: i32, %arg1: i32) -> (i32, i32) {
    %c0_i32 = arith.constant 0 : i32
    %c0_i32_0 = arith.constant 0 : i32
    %c0_i32_1 = arith.constant 0 : i32
    return %c0_i32, %c0_i32_0 : i32, i32
  }
  func.func @transform_5(%arg0: i32, %arg1: i32) -> (i32, i32, i32) {
    %c0_i32 = arith.constant 0 : i32
    %c0_i32_0 = arith.constant 0 : i32
    return %arg1, %arg0, %c0_i32 : i32, i32, i32
  }
  func.func @transform_6(%arg0: i32, %arg1: i32) -> (i32, i32) {
    %c0_i32 = arith.constant 0 : i32
    %c0_i32_0 = arith.constant 0 : i32
    return %arg0, %c0_i32 : i32, i32
  }
}

</mosaic_0001>

<llo_original>
// kernel: rnn_cell_forward.1
$region0: #{rnn_cell_forward.1}
  #allocation0 [shape = 'u32[]', space=smem, size = 0x4, offset = 0x4, fixed_abs, tag = 'smem constant byte address 0x4 - core index']
  #allocation1 [shape = 'u32[144,128]{1,0:T(1,128)}', space=vmem, size = 0x12000, scoped, tag = 'internal scratch']
  #allocation2 [shape = 'f32[8,128]{1,0:T(8,128)}', space=vmem, size = 0x1000, scoped, tag = 'scratch operand']
  %s0 = inlined_call_operand.vmem [shape: f32[8,8,16], index: 0, kind: input, shape index: {}]
  %s1 = inlined_call_operand.vmem [shape: f32[8,128], index: 1, kind: input, shape index: {}, may-alias: {1,6}]
  %s2 = inlined_call_operand.vmem [shape: f32[16,128], index: 2, kind: input, shape index: {}]
  %s3 = inlined_call_operand.vmem [shape: f32[128,128], index: 3, kind: input, shape index: {}]
  %s4 = inlined_call_operand.vmem [shape: f32[1,128], index: 4, kind: input, shape index: {}]
  %s5 = inlined_call_operand.vmem [shape: f32[8,8,128], index: 5, kind: output, shape index: {0}]
  %s6 = inlined_call_operand.vmem [shape: f32[8,128], index: 6, kind: output, shape index: {1}, may-alias: {1,6}]
  %7 = xla_tuple %s5, %s6
  %s8 = sld [smem:[#allocation0]]
  $region42: #{rnn_cell_forward.1} parent=0
    _
  %s10 = ssub.s32 1, %s8
  %s11 = scalar_select 0, %s10, %s8
  // Predicated region
  $region2: #{rnn_cell_forward.1} parent=0 // pred_check
    _
  $region3: #{rnn_cell_forward.1} parent=0 // pred_check_branch
    %13 = sbr.rel (0) target = $region5
  $region4: #{rnn_cell_forward.1} parent=0 // pred_region
    _
  $region5: #{rnn_cell_forward.1} parent=0 // pred_fallthru
    _
  // Predicated region
  $region6: #{rnn_cell_forward.1} parent=0 // pred_check
    _
  $region7: #{rnn_cell_forward.1} parent=0 // pred_check_branch
    %15 = sbr.rel (0) target = $region9
  $region8: #{rnn_cell_forward.1} parent=0 // pred_region
    _
  $region9: #{rnn_cell_forward.1} parent=0 // pred_fallthru
    _
  // Predicated region
  $region10: #{rnn_cell_forward.1} parent=0 // pred_check
    _
  $region11: #{rnn_cell_forward.1} parent=0 // pred_check_branch
    %17 = sbr.rel (0) target = $region13
  $region12: #{rnn_cell_forward.1} parent=0 // pred_region
    _
  $region13: #{rnn_cell_forward.1} parent=0 // pred_fallthru
    _
  // Predicated region
  $region14: #{rnn_cell_forward.1} parent=0 // pred_check
    _
  $region15: #{rnn_cell_forward.1} parent=0 // pred_check_branch
    %19 = sbr.rel (0) target = $region17
  $region16: #{rnn_cell_forward.1} parent=0 // pred_region
    _
  $region17: #{rnn_cell_forward.1} parent=0 // pred_fallthru
    _
  // Predicated region
  $region18: #{rnn_cell_forward.1} parent=0 // pred_check
    _
  $region19: #{rnn_cell_forward.1} parent=0 // pred_check_branch
    %21 = sbr.rel (0) target = $region21
  $region20: #{rnn_cell_forward.1} parent=0 // pred_region
    _
  $region21: #{rnn_cell_forward.1} parent=0 // pred_fallthru
    _
  %p22 = scmp.eq.s32.totalorder 0, 0
  // Predicated region
  $region22: #{rnn_cell_forward.1} parent=0 // pred_check
    %p23 = pneg %p22
  $region23: #{rnn_cell_forward.1} parent=0 // pred_check_branch
    %25 = sbr.rel (%p23) target = $region25
  $region24: #{rnn_cell_forward.1} parent=0 // pred_region
    %v26 = vld [vmem:[%s1] sm:$0xff]
    %27 = vst [vmem:[#allocation2] sm:$0xff] %v26
  $region25: #{rnn_cell_forward.1} parent=0 // pred_fallthru
    _
  %v28 = vld [vmem:[%s2] sm:$0xff]
  %v29 = vld [vmem:[%s2 + $0x8] sm:$0xff]
  %v30 = vld [vmem:[%s3] sm:$0xff]
  %v31 = vld [vmem:[%s3 + $0x8] sm:$0xff]
  %v32 = vld [vmem:[%s3 + $0x10] sm:$0xff]
  %v33 = vld [vmem:[%s3 + $0x18] sm:$0xff]
  %v34 = vld [vmem:[%s3 + $0x20] sm:$0xff]
  %v35 = vld [vmem:[%s3 + $0x28] sm:$0xff]
  %v36 = vld [vmem:[%s3 + $0x30] sm:$0xff]
  %v37 = vld [vmem:[%s3 + $0x38] sm:$0xff]
  %v38 = vld [vmem:[%s3 + $0x40] sm:$0xff]
  %v39 = vld [vmem:[%s3 + $0x48] sm:$0xff]
  %v40 = vld [vmem:[%s3 + $0x50] sm:$0xff]
  %v41 = vld [vmem:[%s3 + $0x58] sm:$0xff]
  %v42 = vld [vmem:[%s3 + $0x60] sm:$0xff]
  %v43 = vld [vmem:[%s3 + $0x68] sm:$0xff]
  %v44 = vld [vmem:[%s3 + $0x70] sm:$0xff]
  %v45 = vld [vmem:[%s3 + $0x78] sm:$0xff]
  %v46 = vld [vmem:[%s4] sm:$0x1]
  %v47 = vld [vmem:[#allocation2] sm:$0xff]
  %v48 = vld [vmem:[%s0] sm:$0xff]
  %49 = vmatprep.subr.mxu0 0.0
  %50 = vmatpush1.msra.mxu0 %v30
  %51 = vmatprep.subr.mxu0 0.0
  %52 = vmatpush1.msra.mxu0 %v31
  %53 = vmatprep.subr.mxu0 0.0
  %54 = vmatpush1.msra.mxu0 %v32
  %55 = vmatprep.subr.mxu0 0.0
  %56 = vmatpush1.msra.mxu0 %v33
  %57 = vmatprep.subr.mxu0 0.0
  %58 = vmatpush1.msra.mxu0 %v34
  %59 = vmatprep.subr.mxu0 0.0
  %60 = vmatpush1.msra.mxu0 %v35
  %61 = vmatprep.subr.mxu0 0.0
  %62 = vmatpush1.msra.mxu0 %v36
  %63 = vmatprep.subr.mxu0 0.0
  %64 = vmatpush1.msra.mxu0 %v37
  %65 = vmatprep.subr.mxu0 0.0
  %66 = vmatpush1.msra.mxu0 %v38
  %67 = vmatprep.subr.mxu0 0.0
  %68 = vmatpush1.msra.mxu0 %v39
  %69 = vmatprep.subr.mxu0 0.0
  %70 = vmatpush1.msra.mxu0 %v40
  %71 = vmatprep.subr.mxu0 0.0
  %72 = vmatpush1.msra.mxu0 %v41
  %73 = vmatprep.subr.mxu0 0.0
  %74 = vmatpush1.msra.mxu0 %v42
  %75 = vmatprep.subr.mxu0 0.0
  %76 = vmatpush1.msra.mxu0 %v43
  %77 = vmatprep.subr.mxu0 0.0
  %78 = vmatpush1.msra.mxu0 %v44
  %79 = vmatprep.subr.mxu0 0.0
  %80 = vmatpush1.msra.mxu0 %v45
  %81 = vmatprep.subr.mxu0 0.0
  %82 = vmatpush1.msra.mxu0 0.0
  %83 = vmatprep.subr.mxu0 0.0
  %84 = vmatpush1.msra.mxu0 0.0
  %85 = vmatprep.subr.mxu0 0.0
  %86 = vmatpush1.msra.mxu0 0.0
  %87 = vmatprep.subr.mxu0 0.0
  %88 = vmatpush1.msra.mxu0 0.0
  %89 = vmatprep.subr.mxu0 0.0
  %90 = vmatpush1.msra.mxu0 0.0
  %91 = vmatprep.subr.mxu0 0.0
  %92 = vmatpush1.msra.mxu0 0.0
  %93 = vmatprep.subr.mxu0 0.0
  %94 = vmatpush1.msra.mxu0 0.0
  %95 = vmatprep.subr.mxu0 0.0
  %96 = vmatpush1.msra.mxu0 0.0
  %97 = vmatprep.subr.mxu0 0.0
  %98 = vmatpush1.msra.mxu0 0.0
  %99 = vmatprep.subr.mxu0 0.0
  %100 = vmatpush1.msra.mxu0 0.0
  %101 = vmatprep.subr.mxu0 0.0
  %102 = vmatpush1.msra.mxu0 0.0
  %103 = vmatprep.subr.mxu0 0.0
  %104 = vmatpush1.msra.mxu0 0.0
  %105 = vmatprep.subr.mxu0 0.0
  %106 = vmatpush1.msra.mxu0 0.0
  %107 = vmatprep.subr.mxu0 0.0
  %108 = vmatpush1.msra.mxu0 0.0
  %109 = vmatprep.subr.mxu0 0.0
  %110 = vmatpush1.msra.mxu0 0.0
  %111 = vmatprep.subr.mxu0 0.0
  %112 = vmatpush1.msra.mxu0 0.0
  %113 = vmatprep.mubr.f32.mxu0 0.0
  %114 = vmatmul.mubr.f32.gmra.mrb[0].mxu0 %v47
  %v115 = vpop.f32.mrb[0].mxu0
  %v116 = vadd.f32 0.0, %v115
  %v117 = vpop.f32.mrb[0].mxu0
  %118 = vdwg.mxu0
  %vm119 = vcmask 130048
  %v121 = vsel %vm119, %v48, 0
  %123 = vmatprep.subr.mxu0 0.0
  %124 = vmatpush1.msra.mxu0 %v28
  %125 = vmatprep.subr.mxu0 0.0
  %126 = vmatpush1.msra.mxu0 %v29
  %127 = vmatprep.subr.mxu0 0.0
  %128 = vmatpush1.msra.mxu0 0.0
  %129 = vmatprep.subr.mxu0 0.0
  %130 = vmatpush1.msra.mxu0 0.0
  %131 = vmatprep.subr.mxu0 0.0
  %132 = vmatpush1.msra.mxu0 0.0
  %133 = vmatprep.subr.mxu0 0.0
  %134 = vmatpush1.msra.mxu0 0.0
  %135 = vmatprep.subr.mxu0 0.0
  %136 = vmatpush1.msra.mxu0 0.0
  %137 = vmatprep.subr.mxu0 0.0
  %138 = vmatpush1.msra.mxu0 0.0
  %139 = vmatprep.subr.mxu0 0.0
  %140 = vmatpush1.msra.mxu0 0.0
  %141 = vmatprep.subr.mxu0 0.0
  %142 = vmatpush1.msra.mxu0 0.0
  %143 = vmatprep.subr.mxu0 0.0
  %144 = vmatpush1.msra.mxu0 0.0
  %145 = vmatprep.subr.mxu0 0.0
  %146 = vmatpush1.msra.mxu0 0.0
  %147 = vmatprep.subr.mxu0 0.0
  %148 = vmatpush1.msra.mxu0 0.0
  %149 = vmatprep.subr.mxu0 0.0
  %150 = vmatpush1.msra.mxu0 0.0
  %151 = vmatprep.subr.mxu0 0.0
  %152 = vmatpush1.msra.mxu0 0.0
  %153 = vmatprep.subr.mxu0 0.0
  %154 = vmatpush1.msra.mxu0 0.0
  %155 = vmatprep.subr.mxu0 0.0
  %156 = vmatpush1.msra.mxu0 0.0
  %157 = vmatprep.subr.mxu0 0.0
  %158 = vmatpush1.msra.mxu0 0.0
  %159 = vmatprep.subr.mxu0 0.0
  %160 = vmatpush1.msra.mxu0 0.0
  %161 = vmatprep.subr.mxu0 0.0
  %162 = vmatpush1.msra.mxu0 0.0
  %163 = vmatprep.subr.mxu0 0.0
  %164 = vmatpush1.msra.mxu0 0.0
  %165 = vmatprep.subr.mxu0 0.0
  %166 = vmatpush1.msra.mxu0 0.0
  %167 = vmatprep.subr.mxu0 0.0
  %168 = vmatpush1.msra.mxu0 0.0
  %169 = vmatprep.subr.mxu0 0.0
  %170 = vmatpush1.msra.mxu0 0.0
  %171 = vmatprep.subr.mxu0 0.0
  %172 = vmatpush1.msra.mxu0 0.0
  %173 = vmatprep.subr.mxu0 0.0
  %174 = vmatpush1.msra.mxu0 0.0
  %175 = vmatprep.subr.mxu0 0.0
  %176 = vmatpush1.msra.mxu0 0.0
  %177 = vmatprep.subr.mxu0 0.0
  %178 = vmatpush1.msra.mxu0 0.0
  %179 = vmatprep.subr.mxu0 0.0
  %180 = vmatpush1.msra.mxu0 0.0
  %181 = vmatprep.subr.mxu0 0.0
  %182 = vmatpush1.msra.mxu0 0.0
  %183 = vmatprep.subr.mxu0 0.0
  %184 = vmatpush1.msra.mxu0 0.0
  %185 = vmatprep.subr.mxu0 0.0
  %186 = vmatpush1.msra.mxu0 0.0
  %187 = vmatprep.mubr.f32.mxu0 0.0
  %188 = vmatmul.mubr.f32.gmra.mrb[0].mxu0 %v121
  %v189 = vpop.f32.mrb[0].mxu0
  %v190 = vadd.f32 %v116, %v189
  %v191 = vpop.f32.mrb[0].mxu0
  %192 = vdwg.mxu0
  %v194 = vlaneseq
  %v195 = vshrl.u32 %v194, 7
  %v196 = vsub.s32 0, %v195
  %v197 = vrot.slane %v46, %v196
  %v199 = vadd.f32 %v190, %v197
  %v200 = vtanh.pop %v199
  %201 = vst [vmem:[%s5] sm:$0xff] %v200
  %s202 = scalar_lea.vmem %s0, 8
  %v203 = vld [vmem:[%s202] sm:$0xff]
  %204 = vmatprep.subr.mxu0 0.0
  %205 = vmatpush1.msra.mxu0 %v30
  %206 = vmatprep.subr.mxu0 0.0
  %207 = vmatpush1.msra.mxu0 %v31
  %208 = vmatprep.subr.mxu0 0.0
  %209 = vmatpush1.msra.mxu0 %v32
  %210 = vmatprep.subr.mxu0 0.0
  %211 = vmatpush1.msra.mxu0 %v33
  %212 = vmatprep.subr.mxu0 0.0
  %213 = vmatpush1.msra.mxu0 %v34
  %214 = vmatprep.subr.mxu0 0.0
  %215 = vmatpush1.msra.mxu0 %v35
  %216 = vmatprep.subr.mxu0 0.0
  %217 = vmatpush1.msra.mxu0 %v36
  %218 = vmatprep.subr.mxu0 0.0
  %219 = vmatpush1.msra.mxu0 %v37
  %220 = vmatprep.subr.mxu0 0.0
  %221 = vmatpush1.msra.mxu0 %v38
  %222 = vmatprep.subr.mxu0 0.0
  %223 = vmatpush1.msra.mxu0 %v39
  %224 = vmatprep.subr.mxu0 0.0
  %225 = vmatpush1.msra.mxu0 %v40
  %226 = vmatprep.subr.mxu0 0.0
  %227 = vmatpush1.msra.mxu0 %v41
  %228 = vmatprep.subr.mxu0 0.0
  %229 = vmatpush1.msra.mxu0 %v42
  %230 = vmatprep.subr.mxu0 0.0
  %231 = vmatpush1.msra.mxu0 %v43
  %232 = vmatprep.subr.mxu0 0.0
  %233 = vmatpush1.msra.mxu0 %v44
  %234 = vmatprep.subr.mxu0 0.0
  %235 = vmatpush1.msra.mxu0 %v45
  %236 = vmatprep.subr.mxu0 0.0
  %237 = vmatpush1.msra.mxu0 0.0
  %238 = vmatprep.subr.mxu0 0.0
  %239 = vmatpush1.msra.mxu0 0.0
  %240 = vmatprep.subr.mxu0 0.0
  %241 = vmatpush1.msra.mxu0 0.0
  %242 = vmatprep.subr.mxu0 0.0
  %243 = vmatpush1.msra.mxu0 0.0
  %244 = vmatprep.subr.mxu0 0.0
  %245 = vmatpush1.msra.mxu0 0.0
  %246 = vmatprep.subr.mxu0 0.0
  %247 = vmatpush1.msra.mxu0 0.0
  %248 = vmatprep.subr.mxu0 0.0
  %249 = vmatpush1.msra.mxu0 0.0
  %250 = vmatprep.subr.mxu0 0.0
  %251 = vmatpush1.msra.mxu0 0.0
  %252 = vmatprep.subr.mxu0 0.0
  %253 = vmatpush1.msra.mxu0 0.0
  %254 = vmatprep.subr.mxu0 0.0
  %255 = vmatpush1.msra.mxu0 0.0
  %256 = vmatprep.subr.mxu0 0.0
  %257 = vmatpush1.msra.mxu0 0.0
  %258 = vmatprep.subr.mxu0 0.0
  %259 = vmatpush1.msra.mxu0 0.0
  %260 = vmatprep.subr.mxu0 0.0
  %261 = vmatpush1.msra.mxu0 0.0
  %262 = vmatprep.subr.mxu0 0.0
  %263 = vmatpush1.msra.mxu0 0.0
  %264 = vmatprep.subr.mxu0 0.0
  %265 = vmatpush1.msra.mxu0 0.0
  %266 = vmatprep.subr.mxu0 0.0
  %267 = vmatpush1.msra.mxu0 0.0
  %268 = vmatprep.mubr.f32.mxu0 0.0
  %269 = vmatmul.mubr.f32.gmra.mrb[0].mxu0 %v200
  %v270 = vpop.f32.mrb[0].mxu0
  %v271 = vadd.f32 0.0, %v270
  %v272 = vpop.f32.mrb[0].mxu0
  %273 = vdwg.mxu0
  %v275 = vsel %vm119, %v203, 0
  %277 = vmatprep.subr.mxu0 0.0
  %278 = vmatpush1.msra.mxu0 %v28
  %279 = vmatprep.subr.mxu0 0.0
  %280 = vmatpush1.msra.mxu0 %v29
  %281 = vmatprep.subr.mxu0 0.0
  %282 = vmatpush1.msra.mxu0 0.0
  %283 = vmatprep.subr.mxu0 0.0
  %284 = vmatpush1.msra.mxu0 0.0
  %285 = vmatprep.subr.mxu0 0.0
  %286 = vmatpush1.msra.mxu0 0.0
  %287 = vmatprep.subr.mxu0 0.0
  %288 = vmatpush1.msra.mxu0 0.0
  %289 = vmatprep.subr.mxu0 0.0
  %290 = vmatpush1.msra.mxu0 0.0
  %291 = vmatprep.subr.mxu0 0.0
  %292 = vmatpush1.msra.mxu0 0.0
  %293 = vmatprep.subr.mxu0 0.0
  %294 = vmatpush1.msra.mxu0 0.0
  %295 = vmatprep.subr.mxu0 0.0
  %296 = vmatpush1.msra.mxu0 0.0
  %297 = vmatprep.subr.mxu0 0.0
  %298 = vmatpush1.msra.mxu0 0.0
  %299 = vmatprep.subr.mxu0 0.0
  %300 = vmatpush1.msra.mxu0 0.0
  %301 = vmatprep.subr.mxu0 0.0
  %302 = vmatpush1.msra.mxu0 0.0
  %303 = vmatprep.subr.mxu0 0.0
  %304 = vmatpush1.msra.mxu0 0.0
  %305 = vmatprep.subr.mxu0 0.0
  %306 = vmatpush1.msra.mxu0 0.0
  %307 = vmatprep.subr.mxu0 0.0
  %308 = vmatpush1.msra.mxu0 0.0
  %309 = vmatprep.subr.mxu0 0.0
  %310 = vmatpush1.msra.mxu0 0.0
  %311 = vmatprep.subr.mxu0 0.0
  %312 = vmatpush1.msra.mxu0 0.0
  %313 = vmatprep.subr.mxu0 0.0
  %314 = vmatpush1.msra.mxu0 0.0
  %315 = vmatprep.subr.mxu0 0.0
  %316 = vmatpush1.msra.mxu0 0.0
  %317 = vmatprep.subr.mxu0 0.0
  %318 = vmatpush1.msra.mxu0 0.0
  %319 = vmatprep.subr.mxu0 0.0
  %320 = vmatpush1.msra.mxu0 0.0
  %321 = vmatprep.subr.mxu0 0.0
  %322 = vmatpush1.msra.mxu0 0.0
  %323 = vmatprep.subr.mxu0 0.0
  %324 = vmatpush1.msra.mxu0 0.0
  %325 = vmatprep.subr.mxu0 0.0
  %326 = vmatpush1.msra.mxu0 0.0
  %327 = vmatprep.subr.mxu0 0.0
  %328 = vmatpush1.msra.mxu0 0.0
  %329 = vmatprep.subr.mxu0 0.0
  %330 = vmatpush1.msra.mxu0 0.0
  %331 = vmatprep.subr.mxu0 0.0
  %332 = vmatpush1.msra.mxu0 0.0
  %333 = vmatprep.subr.mxu0 0.0
  %334 = vmatpush1.msra.mxu0 0.0
  %335 = vmatprep.subr.mxu0 0.0
  %336 = vmatpush1.msra.mxu0 0.0
  %337 = vmatprep.subr.mxu0 0.0
  %338 = vmatpush1.msra.mxu0 0.0
  %339 = vmatprep.subr.mxu0 0.0
  %340 = vmatpush1.msra.mxu0 0.0
  %341 = vmatprep.mubr.f32.mxu0 0.0
  %342 = vmatmul.mubr.f32.gmra.mrb[0].mxu0 %v275
  %v343 = vpop.f32.mrb[0].mxu0
  %v344 = vadd.f32 %v271, %v343
  %v345 = vpop.f32.mrb[0].mxu0
  %346 = vdwg.mxu0
  %v347 = vadd.f32 %v344, %v197
  %v348 = vtanh.pop %v347
  %s349 = scalar_lea.vmem %s5, 8
  %350 = vst [vmem:[%s349] sm:$0xff] %v348
  %s351 = scalar_lea.vmem %s0, 16
  %v352 = vld [vmem:[%s351] sm:$0xff]
  %353 = vmatprep.subr.mxu0 0.0
  %354 = vmatpush1.msra.mxu0 %v30
  %355 = vmatprep.subr.mxu0 0.0
  %356 = vmatpush1.msra.mxu0 %v31
  %357 = vmatprep.subr.mxu0 0.0
  %358 = vmatpush1.msra.mxu0 %v32
  %359 = vmatprep.subr.mxu0 0.0
  %360 = vmatpush1.msra.mxu0 %v33
  %361 = vmatprep.subr.mxu0 0.0
  %362 = vmatpush1.msra.mxu0 %v34
  %363 = vmatprep.subr.mxu0 0.0
  %364 = vmatpush1.msra.mxu0 %v35
  %365 = vmatprep.subr.mxu0 0.0
  %366 = vmatpush1.msra.mxu0 %v36
  %367 = vmatprep.subr.mxu0 0.0
  %368 = vmatpush1.msra.mxu0 %v37
  %369 = vmatprep.subr.mxu0 0.0
  %370 = vmatpush1.msra.mxu0 %v38
  %371 = vmatprep.subr.mxu0 0.0
  %372 = vmatpush1.msra.mxu0 %v39
  %373 = vmatprep.subr.mxu0 0.0
  %374 = vmatpush1.msra.mxu0 %v40
  %375 = vmatprep.subr.mxu0 0.0
  %376 = vmatpush1.msra.mxu0 %v41
  %377 = vmatprep.subr.mxu0 0.0
  %378 = vmatpush1.msra.mxu0 %v42
  %379 = vmatprep.subr.mxu0 0.0
  %380 = vmatpush1.msra.mxu0 %v43
  %381 = vmatprep.subr.mxu0 0.0
  %382 = vmatpush1.msra.mxu0 %v44
  %383 = vmatprep.subr.mxu0 0.0
  %384 = vmatpush1.msra.mxu0 %v45
  %385 = vmatprep.subr.mxu0 0.0
  %386 = vmatpush1.msra.mxu0 0.0
  %387 = vmatprep.subr.mxu0 0.0
  %388 = vmatpush1.msra.mxu0 0.0
  %389 = vmatprep.subr.mxu0 0.0
  %390 = vmatpush1.msra.mxu0 0.0
  %391 = vmatprep.subr.mxu0 0.0
  %392 = vmatpush1.msra.mxu0 0.0
  %393 = vmatprep.subr.mxu0 0.0
  %394 = vmatpush1.msra.mxu0 0.0
  %395 = vmatprep.subr.mxu0 0.0
  %396 = vmatpush1.msra.mxu0 0.0
  %397 = vmatprep.subr.mxu0 0.0
  %398 = vmatpush1.msra.mxu0 0.0
  %399 = vmatprep.subr.mxu0 0.0
  %400 = vmatpush1.msra.mxu0 0.0
  %401 = vmatprep.subr.mxu0 0.0
  %402 = vmatpush1.msra.mxu0 0.0
  %403 = vmatprep.subr.mxu0 0.0
  %404 = vmatpush1.msra.mxu0 0.0
  %405 = vmatprep.subr.mxu0 0.0
  %406 = vmatpush1.msra.mxu0 0.0
  %407 = vmatprep.subr.mxu0 0.0
  %408 = vmatpush1.msra.mxu0 0.0
  %409 = vmatprep.subr.mxu0 0.0
  %410 = vmatpush1.msra.mxu0 0.0
  %411 = vmatprep.subr.mxu0 0.0
  %412 = vmatpush1.msra.mxu0 0.0
  %413 = vmatprep.subr.mxu0 0.0
  %414 = vmatpush1.msra.mxu0 0.0
  %415 = vmatprep.subr.mxu0 0.0
  %416 = vmatpush1.msra.mxu0 0.0
  %417 = vmatprep.mubr.f32.mxu0 0.0
  %418 = vmatmul.mubr.f32.gmra.mrb[0].mxu0 %v348
  %v419 = vpop.f32.mrb[0].mxu0
  %v420 = vadd.f32 0.0, %v419
  %v421 = vpop.f32.mrb[0].mxu0
  %422 = vdwg.mxu0
  %v424 = vsel %vm119, %v352, 0
  %426 = vmatprep.subr.mxu0 0.0
  %427 = vmatpush1.msra.mxu0 %v28
  %428 = vmatprep.subr.mxu0 0.0
  %429 = vmatpush1.msra.mxu0 %v29
  %430 = vmatprep.subr.mxu0 0.0
  %431 = vmatpush1.msra.mxu0 0.0
  %432 = vmatprep.subr.mxu0 0.0
  %433 = vmatpush1.msra.mxu0 0.0
  %434 = vmatprep.subr.mxu0 0.0
  %435 = vmatpush1.msra.mxu0 0.0
  %436 = vmatprep.subr.mxu0 0.0
  %437 = vmatpush1.msra.mxu0 0.0
  %438 = vmatprep.subr.mxu0 0.0
  %439 = vmatpush1.msra.mxu0 0.0
  %440 = vmatprep.subr.mxu0 0.0
  %441 = vmatpush1.msra.mxu0 0.0
  %442 = vmatprep.subr.mxu0 0.0
  %443 = vmatpush1.msra.mxu0 0.0
  %444 = vmatprep.subr.mxu0 0.0
  %445 = vmatpush1.msra.mxu0 0.0
  %446 = vmatprep.subr.mxu0 0.0
  %447 = vmatpush1.msra.mxu0 0.0
  %448 = vmatprep.subr.mxu0 0.0
  %449 = vmatpush1.msra.mxu0 0.0
  %450 = vmatprep.subr.mxu0 0.0
  %451 = vmatpush1.msra.mxu0 0.0
  %452 = vmatprep.subr.mxu0 0.0
  %453 = vmatpush1.msra.mxu0 0.0
  %454 = vmatprep.subr.mxu0 0.0
  %455 = vmatpush1.msra.mxu0 0.0
  %456 = vmatprep.subr.mxu0 0.0
  %457 = vmatpush1.msra.mxu0 0.0
  %458 = vmatprep.subr.mxu0 0.0
  %459 = vmatpush1.msra.mxu0 0.0
  %460 = vmatprep.subr.mxu0 0.0
  %461 = vmatpush1.msra.mxu0 0.0
  %462 = vmatprep.subr.mxu0 0.0
  %463 = vmatpush1.msra.mxu0 0.0
  %464 = vmatprep.subr.mxu0 0.0
  %465 = vmatpush1.msra.mxu0 0.0
  %466 = vmatprep.subr.mxu0 0.0
  %467 = vmatpush1.msra.mxu0 0.0
  %468 = vmatprep.subr.mxu0 0.0
  %469 = vmatpush1.msra.mxu0 0.0
  %470 = vmatprep.subr.mxu0 0.0
  %471 = vmatpush1.msra.mxu0 0.0
  %472 = vmatprep.subr.mxu0 0.0
  %473 = vmatpush1.msra.mxu0 0.0
  %474 = vmatprep.subr.mxu0 0.0
  %475 = vmatpush1.msra.mxu0 0.0
  %476 = vmatprep.subr.mxu0 0.0
  %477 = vmatpush1.msra.mxu0 0.0
  %478 = vmatprep.subr.mxu0 0.0
  %479 = vmatpush1.msra.mxu0 0.0
  %480 = vmatprep.subr.mxu0 0.0
  %481 = vmatpush1.msra.mxu0 0.0
  %482 = vmatprep.subr.mxu0 0.0
  %483 = vmatpush1.msra.mxu0 0.0
  %484 = vmatprep.subr.mxu0 0.0
  %485 = vmatpush1.msra.mxu0 0.0
  %486 = vmatprep.subr.mxu0 0.0
  %487 = vmatpush1.msra.mxu0 0.0
  %488 = vmatprep.subr.mxu0 0.0
  %489 = vmatpush1.msra.mxu0 0.0
  %490 = vmatprep.mubr.f32.mxu0 0.0
  %491 = vmatmul.mubr.f32.gmra.mrb[0].mxu0 %v424
  %v492 = vpop.f32.mrb[0].mxu0
  %v493 = vadd.f32 %v420, %v492
  %v494 = vpop.f32.mrb[0].mxu0
  %495 = vdwg.mxu0
  %v496 = vadd.f32 %v493, %v197
  %v497 = vtanh.pop %v496
  %s498 = scalar_lea.vmem %s5, 16
  %499 = vst [vmem:[%s498] sm:$0xff] %v497
  %s500 = scalar_lea.vmem %s0, 24
  %v501 = vld [vmem:[%s500] sm:$0xff]
  %502 = vmatprep.subr.mxu0 0.0
  %503 = vmatpush1.msra.mxu0 %v30
  %504 = vmatprep.subr.mxu0 0.0
  %505 = vmatpush1.msra.mxu0 %v31
  %506 = vmatprep.subr.mxu0 0.0
  %507 = vmatpush1.msra.mxu0 %v32
  %508 = vmatprep.subr.mxu0 0.0
  %509 = vmatpush1.msra.mxu0 %v33
  %510 = vmatprep.subr.mxu0 0.0
  %511 = vmatpush1.msra.mxu0 %v34
  %512 = vmatprep.subr.mxu0 0.0
  %513 = vmatpush1.msra.mxu0 %v35
  %514 = vmatprep.subr.mxu0 0.0
  %515 = vmatpush1.msra.mxu0 %v36
  %516 = vmatprep.subr.mxu0 0.0
  %517 = vmatpush1.msra.mxu0 %v37
  %518 = vmatprep.subr.mxu0 0.0
  %519 = vmatpush1.msra.mxu0 %v38
  %520 = vmatprep.subr.mxu0 0.0
  %521 = vmatpush1.msra.mxu0 %v39
  %522 = vmatprep.subr.mxu0 0.0
  %523 = vmatpush1.msra.mxu0 %v40
  %524 = vmatprep.subr.mxu0 0.0
  %525 = vmatpush1.msra.mxu0 %v41
  %526 = vmatprep.subr.mxu0 0.0
  %527 = vmatpush1.msra.mxu0 %v42
  %528 = vmatprep.subr.mxu0 0.0
  %529 = vmatpush1.msra.mxu0 %v43
  %530 = vmatprep.subr.mxu0 0.0
  %531 = vmatpush1.msra.mxu0 %v44
  %532 = vmatprep.subr.mxu0 0.0
  %533 = vmatpush1.msra.mxu0 %v45
  %534 = vmatprep.subr.mxu0 0.0
  %535 = vmatpush1.msra.mxu0 0.0
  %536 = vmatprep.subr.mxu0 0.0
  %537 = vmatpush1.msra.mxu0 0.0
  %538 = vmatprep.subr.mxu0 0.0
  %539 = vmatpush1.msra.mxu0 0.0
  %540 = vmatprep.subr.mxu0 0.0
  %541 = vmatpush1.msra.mxu0 0.0
  %542 = vmatprep.subr.mxu0 0.0
  %543 = vmatpush1.msra.mxu0 0.0
  %544 = vmatprep.subr.mxu0 0.0
  %545 = vmatpush1.msra.mxu0 0.0
  %546 = vmatprep.subr.mxu0 0.0
  %547 = vmatpush1.msra.mxu0 0.0
  %548 = vmatprep.subr.mxu0 0.0
  %549 = vmatpush1.msra.mxu0 0.0
  %550 = vmatprep.subr.mxu0 0.0
  %551 = vmatpush1.msra.mxu0 0.0
  %552 = vmatprep.subr.mxu0 0.0
  %553 = vmatpush1.msra.mxu0 0.0
  %554 = vmatprep.subr.mxu0 0.0
  %555 = vmatpush1.msra.mxu0 0.0
  %556 = vmatprep.subr.mxu0 0.0
  %557 = vmatpush1.msra.mxu0 0.0
  %558 = vmatprep.subr.mxu0 0.0
  %559 = vmatpush1.msra.mxu0 0.0
  %560 = vmatprep.subr.mxu0 0.0
  %561 = vmatpush1.msra.mxu0 0.0
  %562 = vmatprep.subr.mxu0 0.0
  %563 = vmatpush1.msra.mxu0 0.0
  %564 = vmatprep.subr.mxu0 0.0
  %565 = vmatpush1.msra.mxu0 0.0
  %566 = vmatprep.mubr.f32.mxu0 0.0
  %567 = vmatmul.mubr.f32.gmra.mrb[0].mxu0 %v497
  %v568 = vpop.f32.mrb[0].mxu0
  %v569 = vadd.f32 0.0, %v568
  %v570 = vpop.f32.mrb[0].mxu0
  %571 = vdwg.mxu0
  %v573 = vsel %vm119, %v501, 0
  %575 = vmatprep.subr.mxu0 0.0
  %576 = vmatpush1.msra.mxu0 %v28
  %577 = vmatprep.subr.mxu0 0.0
  %578 = vmatpush1.msra.mxu0 %v29
  %579 = vmatprep.subr.mxu0 0.0
  %580 = vmatpush1.msra.mxu0 0.0
  %581 = vmatprep.subr.mxu0 0.0
  %582 = vmatpush1.msra.mxu0 0.0
  %583 = vmatprep.subr.mxu0 0.0
  %584 = vmatpush1.msra.mxu0 0.0
  %585 = vmatprep.subr.mxu0 0.0
  %586 = vmatpush1.msra.mxu0 0.0
  %587 = vmatprep.subr.mxu0 0.0
  %588 = vmatpush1.msra.mxu0 0.0
  %589 = vmatprep.subr.mxu0 0.0
  %590 = vmatpush1.msra.mxu0 0.0
  %591 = vmatprep.subr.mxu0 0.0
  %592 = vmatpush1.msra.mxu0 0.0
  %593 = vmatprep.subr.mxu0 0.0
  %594 = vmatpush1.msra.mxu0 0.0
  %595 = vmatprep.subr.mxu0 0.0
  %596 = vmatpush1.msra.mxu0 0.0
  %597 = vmatprep.subr.mxu0 0.0
  %598 = vmatpush1.msra.mxu0 0.0
  %599 = vmatprep.subr.mxu0 0.0
  %600 = vmatpush1.msra.mxu0 0.0
  %601 = vmatprep.subr.mxu0 0.0
  %602 = vmatpush1.msra.mxu0 0.0
  %603 = vmatprep.subr.mxu0 0.0
  %604 = vmatpush1.msra.mxu0 0.0
  %605 = vmatprep.subr.mxu0 0.0
  %606 = vmatpush1.msra.mxu0 0.0
  %607 = vmatprep.subr.mxu0 0.0
  %608 = vmatpush1.msra.mxu0 0.0
  %609 = vmatprep.subr.mxu0 0.0
  %610 = vmatpush1.msra.mxu0 0.0
  %611 = vmatprep.subr.mxu0 0.0
  %612 = vmatpush1.msra.mxu0 0.0
  %613 = vmatprep.subr.mxu0 0.0
  %614 = vmatpush1.msra.mxu0 0.0
  %615 = vmatprep.subr.mxu0 0.0
  %616 = vmatpush1.msra.mxu0 0.0
  %617 = vmatprep.subr.mxu0 0.0
  %618 = vmatpush1.msra.mxu0 0.0
  %619 = vmatprep.subr.mxu0 0.0
  %620 = vmatpush1.msra.mxu0 0.0
  %621 = vmatprep.subr.mxu0 0.0
  %622 = vmatpush1.msra.mxu0 0.0
  %623 = vmatprep.subr.mxu0 0.0
  %624 = vmatpush1.msra.mxu0 0.0
  %625 = vmatprep.subr.mxu0 0.0
  %626 = vmatpush1.msra.mxu0 0.0
  %627 = vmatprep.subr.mxu0 0.0
  %628 = vmatpush1.msra.mxu0 0.0
  %629 = vmatprep.subr.mxu0 0.0
  %630 = vmatpush1.msra.mxu0 0.0
  %631 = vmatprep.subr.mxu0 0.0
  %632 = vmatpush1.msra.mxu0 0.0
  %633 = vmatprep.subr.mxu0 0.0
  %634 = vmatpush1.msra.mxu0 0.0
  %635 = vmatprep.subr.mxu0 0.0
  %636 = vmatpush1.msra.mxu0 0.0
  %637 = vmatprep.subr.mxu0 0.0
  %638 = vmatpush1.msra.mxu0 0.0
  %639 = vmatprep.mubr.f32.mxu0 0.0
  %640 = vmatmul.mubr.f32.gmra.mrb[0].mxu0 %v573
  %v641 = vpop.f32.mrb[0].mxu0
  %v642 = vadd.f32 %v569, %v641
  %v643 = vpop.f32.mrb[0].mxu0
  %644 = vdwg.mxu0
  %v645 = vadd.f32 %v642, %v197
  %v646 = vtanh.pop %v645
  %s647 = scalar_lea.vmem %s5, 24
  %648 = vst [vmem:[%s647] sm:$0xff] %v646
  %s649 = scalar_lea.vmem %s0, 32
  %v650 = vld [vmem:[%s649] sm:$0xff]
  %651 = vmatprep.subr.mxu0 0.0
  %652 = vmatpush1.msra.mxu0 %v30
  %653 = vmatprep.subr.mxu0 0.0
  %654 = vmatpush1.msra.mxu0 %v31
  %655 = vmatprep.subr.mxu0 0.0
  %656 = vmatpush1.msra.mxu0 %v32
  %657 = vmatprep.subr.mxu0 0.0
  %658 = vmatpush1.msra.mxu0 %v33
  %659 = vmatprep.subr.mxu0 0.0
  %660 = vmatpush1.msra.mxu0 %v34
  %661 = vmatprep.subr.mxu0 0.0
  %662 = vmatpush1.msra.mxu0 %v35
  %663 = vmatprep.subr.mxu0 0.0
  %664 = vmatpush1.msra.mxu0 %v36
  %665 = vmatprep.subr.mxu0 0.0
  %666 = vmatpush1.msra.mxu0 %v37
  %667 = vmatprep.subr.mxu0 0.0
  %668 = vmatpush1.msra.mxu0 %v38
  %669 = vmatprep.subr.mxu0 0.0
  %670 = vmatpush1.msra.mxu0 %v39
  %671 = vmatprep.subr.mxu0 0.0
  %672 = vmatpush1.msra.mxu0 %v40
  %673 = vmatprep.subr.mxu0 0.0
  %674 = vmatpush1.msra.mxu0 %v41
  %675 = vmatprep.subr.mxu0 0.0
  %676 = vmatpush1.msra.mxu0 %v42
  %677 = vmatprep.subr.mxu0 0.0
  %678 = vmatpush1.msra.mxu0 %v43
  %679 = vmatprep.subr.mxu0 0.0
  %680 = vmatpush1.msra.mxu0 %v44
  %681 = vmatprep.subr.mxu0 0.0
  %682 = vmatpush1.msra.mxu0 %v45
  %683 = vmatprep.subr.mxu0 0.0
  %684 = vmatpush1.msra.mxu0 0.0
  %685 = vmatprep.subr.mxu0 0.0
  %686 = vmatpush1.msra.mxu0 0.0
  %687 = vmatprep.subr.mxu0 0.0
  %688 = vmatpush1.msra.mxu0 0.0
  %689 = vmatprep.subr.mxu0 0.0
  %690 = vmatpush1.msra.mxu0 0.0
  %691 = vmatprep.subr.mxu0 0.0
  %692 = vmatpush1.msra.mxu0 0.0
  %693 = vmatprep.subr.mxu0 0.0
  %694 = vmatpush1.msra.mxu0 0.0
  %695 = vmatprep.subr.mxu0 0.0
  %696 = vmatpush1.msra.mxu0 0.0
  %697 = vmatprep.subr.mxu0 0.0
  %698 = vmatpush1.msra.mxu0 0.0
  %699 = vmatprep.subr.mxu0 0.0
  %700 = vmatpush1.msra.mxu0 0.0
  %701 = vmatprep.subr.mxu0 0.0
  %702 = vmatpush1.msra.mxu0 0.0
  %703 = vmatprep.subr.mxu0 0.0
  %704 = vmatpush1.msra.mxu0 0.0
  %705 = vmatprep.subr.mxu0 0.0
  %706 = vmatpush1.msra.mxu0 0.0
  %707 = vmatprep.subr.mxu0 0.0
  %708 = vmatpush1.msra.mxu0 0.0
  %709 = vmatprep.subr.mxu0 0.0
  %710 = vmatpush1.msra.mxu0 0.0
  %711 = vmatprep.subr.mxu0 0.0
  %712 = vmatpush1.msra.mxu0 0.0
  %713 = vmatprep.subr.mxu0 0.0
  %714 = vmatpush1.msra.mxu0 0.0
  %715 = vmatprep.mubr.f32.mxu0 0.0
  %716 = vmatmul.mubr.f32.gmra.mrb[0].mxu0 %v646
  %v717 = vpop.f32.mrb[0].mxu0
  %v718 = vadd.f32 0.0, %v717
  %v719 = vpop.f32.mrb[0].mxu0
  %720 = vdwg.mxu0
  %v722 = vsel %vm119, %v650, 0
  %724 = vmatprep.subr.mxu0 0.0
  %725 = vmatpush1.msra.mxu0 %v28
  %726 = vmatprep.subr.mxu0 0.0
  %727 = vmatpush1.msra.mxu0 %v29
  %728 = vmatprep.subr.mxu0 0.0
  %729 = vmatpush1.msra.mxu0 0.0
  %730 = vmatprep.subr.mxu0 0.0
  %731 = vmatpush1.msra.mxu0 0.0
  %732 = vmatprep.subr.mxu0 0.0
  %733 = vmatpush1.msra.mxu0 0.0
  %734 = vmatprep.subr.mxu0 0.0
  %735 = vmatpush1.msra.mxu0 0.0
  %736 = vmatprep.subr.mxu0 0.0
  %737 = vmatpush1.msra.mxu0 0.0
  %738 = vmatprep.subr.mxu0 0.0
  %739 = vmatpush1.msra.mxu0 0.0
  %740 = vmatprep.subr.mxu0 0.0
  %741 = vmatpush1.msra.mxu0 0.0
  %742 = vmatprep.subr.mxu0 0.0
  %743 = vmatpush1.msra.mxu0 0.0
  %744 = vmatprep.subr.mxu0 0.0
  %745 = vmatpush1.msra.mxu0 0.0
  %746 = vmatprep.subr.mxu0 0.0
  %747 = vmatpush1.msra.mxu0 0.0
  %748 = vmatprep.subr.mxu0 0.0
  %749 = vmatpush1.msra.mxu0 0.0
  %750 = vmatprep.subr.mxu0 0.0
  %751 = vmatpush1.msra.mxu0 0.0
  %752 = vmatprep.subr.mxu0 0.0
  %753 = vmatpush1.msra.mxu0 0.0
  %754 = vmatprep.subr.mxu0 0.0
  %755 = vmatpush1.msra.mxu0 0.0
  %756 = vmatprep.subr.mxu0 0.0
  %757 = vmatpush1.msra.mxu0 0.0
  %758 = vmatprep.subr.mxu0 0.0
  %759 = vmatpush1.msra.mxu0 0.0
  %760 = vmatprep.subr.mxu0 0.0
  %761 = vmatpush1.msra.mxu0 0.0
  %762 = vmatprep.subr.mxu0 0.0
  %763 = vmatpush1.msra.mxu0 0.0
  %764 = vmatprep.subr.mxu0 0.0
  %765 = vmatpush1.msra.mxu0 0.0
  %766 = vmatprep.subr.mxu0 0.0
  %767 = vmatpush1.msra.mxu0 0.0
  %768 = vmatprep.subr.mxu0 0.0
  %769 = vmatpush1.msra.mxu0 0.0
  %770 = vmatprep.subr.mxu0 0.0
  %771 = vmatpush1.msra.mxu0 0.0
  %772 = vmatprep.subr.mxu0 0.0
  %773 = vmatpush1.msra.mxu0 0.0
  %774 = vmatprep.subr.mxu0 0.0
  %775 = vmatpush1.msra.mxu0 0.0
  %776 = vmatprep.subr.mxu0 0.0
  %777 = vmatpush1.msra.mxu0 0.0
  %778 = vmatprep.subr.mxu0 0.0
  %779 = vmatpush1.msra.mxu0 0.0
  %780 = vmatprep.subr.mxu0 0.0
  %781 = vmatpush1.msra.mxu0 0.0
  %782 = vmatprep.subr.mxu0 0.0
  %783 = vmatpush1.msra.mxu0 0.0
  %784 = vmatprep.subr.mxu0 0.0
  %785 = vmatpush1.msra.mxu0 0.0
  %786 = vmatprep.subr.mxu0 0.0
  %787 = vmatpush1.msra.mxu0 0.0
  %788 = vmatprep.mubr.f32.mxu0 0.0
  %789 = vmatmul.mubr.f32.gmra.mrb[0].mxu0 %v722
  %v790 = vpop.f32.mrb[0].mxu0
  %v791 = vadd.f32 %v718, %v790
  %v792 = vpop.f32.mrb[0].mxu0
  %793 = vdwg.mxu0
  %v794 = vadd.f32 %v791, %v197
  %v795 = vtanh.pop %v794
  %s796 = scalar_lea.vmem %s5, 32
  %797 = vst [vmem:[%s796] sm:$0xff] %v795
  %s798 = scalar_lea.vmem %s0, 40
  %v799 = vld [vmem:[%s798] sm:$0xff]
  %800 = vmatprep.subr.mxu0 0.0
  %801 = vmatpush1.msra.mxu0 %v30
  %802 = vmatprep.subr.mxu0 0.0
  %803 = vmatpush1.msra.mxu0 %v31
  %804 = vmatprep.subr.mxu0 0.0
  %805 = vmatpush1.msra.mxu0 %v32
  %806 = vmatprep.subr.mxu0 0.0
  %807 = vmatpush1.msra.mxu0 %v33
  %808 = vmatprep.subr.mxu0 0.0
  %809 = vmatpush1.msra.mxu0 %v34
  %810 = vmatprep.subr.mxu0 0.0
  %811 = vmatpush1.msra.mxu0 %v35
  %812 = vmatprep.subr.mxu0 0.0
  %813 = vmatpush1.msra.mxu0 %v36
  %814 = vmatprep.subr.mxu0 0.0
  %815 = vmatpush1.msra.mxu0 %v37
  %816 = vmatprep.subr.mxu0 0.0
  %817 = vmatpush1.msra.mxu0 %v38
  %818 = vmatprep.subr.mxu0 0.0
  %819 = vmatpush1.msra.mxu0 %v39
  %820 = vmatprep.subr.mxu0 0.0
  %821 = vmatpush1.msra.mxu0 %v40
  %822 = vmatprep.subr.mxu0 0.0
  %823 = vmatpush1.msra.mxu0 %v41
  %824 = vmatprep.subr.mxu0 0.0
  %825 = vmatpush1.msra.mxu0 %v42
  %826 = vmatprep.subr.mxu0 0.0
  %827 = vmatpush1.msra.mxu0 %v43
  %828 = vmatprep.subr.mxu0 0.0
  %829 = vmatpush1.msra.mxu0 %v44
  %830 = vmatprep.subr.mxu0 0.0
  %831 = vmatpush1.msra.mxu0 %v45
  %832 = vmatprep.subr.mxu0 0.0
  %833 = vmatpush1.msra.mxu0 0.0
  %834 = vmatprep.subr.mxu0 0.0
  %835 = vmatpush1.msra.mxu0 0.0
  %836 = vmatprep.subr.mxu0 0.0
  %837 = vmatpush1.msra.mxu0 0.0
  %838 = vmatprep.subr.mxu0 0.0
  %839 = vmatpush1.msra.mxu0 0.0
  %840 = vmatprep.subr.mxu0 0.0
  %841 = vmatpush1.msra.mxu0 0.0
  %842 = vmatprep.subr.mxu0 0.0
  %843 = vmatpush1.msra.mxu0 0.0
  %844 = vmatprep.subr.mxu0 0.0
  %845 = vmatpush1.msra.mxu0 0.0
  %846 = vmatprep.subr.mxu0 0.0
  %847 = vmatpush1.msra.mxu0 0.0
  %848 = vmatprep.subr.mxu0 0.0
  %849 = vmatpush1.msra.mxu0 0.0
  %850 = vmatprep.subr.mxu0 0.0
  %851 = vmatpush1.msra.mxu0 0.0
  %852 = vmatprep.subr.mxu0 0.0
  %853 = vmatpush1.msra.mxu0 0.0
  %854 = vmatprep.subr.mxu0 0.0
  %855 = vmatpush1.msra.mxu0 0.0
  %856 = vmatprep.subr.mxu0 0.0
  %857 = vmatpush1.msra.mxu0 0.0
  %858 = vmatprep.subr.mxu0 0.0
  %859 = vmatpush1.msra.mxu0 0.0
  %860 = vmatprep.subr.mxu0 0.0
  %861 = vmatpush1.msra.mxu0 0.0
  %862 = vmatprep.subr.mxu0 0.0
  %863 = vmatpush1.msra.mxu0 0.0
  %864 = vmatprep.mubr.f32.mxu0 0.0
  %865 = vmatmul.mubr.f32.gmra.mrb[0].mxu0 %v795
  %v866 = vpop.f32.mrb[0].mxu0
  %v867 = vadd.f32 0.0, %v866
  %v868 = vpop.f32.mrb[0].mxu0
  %869 = vdwg.mxu0
  %v871 = vsel %vm119, %v799, 0
  %873 = vmatprep.subr.mxu0 0.0
  %874 = vmatpush1.msra.mxu0 %v28
  %875 = vmatprep.subr.mxu0 0.0
  %876 = vmatpush1.msra.mxu0 %v29
  %877 = vmatprep.subr.mxu0 0.0
  %878 = vmatpush1.msra.mxu0 0.0
  %879 = vmatprep.subr.mxu0 0.0
  %880 = vmatpush1.msra.mxu0 0.0
  %881 = vmatprep.subr.mxu0 0.0
  %882 = vmatpush1.msra.mxu0 0.0
  %883 = vmatprep.subr.mxu0 0.0
  %884 = vmatpush1.msra.mxu0 0.0
  %885 = vmatprep.subr.mxu0 0.0
  %886 = vmatpush1.msra.mxu0 0.0
  %887 = vmatprep.subr.mxu0 0.0
  %888 = vmatpush1.msra.mxu0 0.0
  %889 = vmatprep.subr.mxu0 0.0
  %890 = vmatpush1.msra.mxu0 0.0
  %891 = vmatprep.subr.mxu0 0.0
  %892 = vmatpush1.msra.mxu0 0.0
  %893 = vmatprep.subr.mxu0 0.0
  %894 = vmatpush1.msra.mxu0 0.0
  %895 = vmatprep.subr.mxu0 0.0
  %896 = vmatpush1.msra.mxu0 0.0
  %897 = vmatprep.subr.mxu0 0.0
  %898 = vmatpush1.msra.mxu0 0.0
  %899 = vmatprep.subr.mxu0 0.0
  %900 = vmatpush1.msra.mxu0 0.0
  %901 = vmatprep.subr.mxu0 0.0
  %902 = vmatpush1.msra.mxu0 0.0
  %903 = vmatprep.subr.mxu0 0.0
  %904 = vmatpush1.msra.mxu0 0.0
  %905 = vmatprep.subr.mxu0 0.0
  %906 = vmatpush1.msra.mxu0 0.0
  %907 = vmatprep.subr.mxu0 0.0
  %908 = vmatpush1.msra.mxu0 0.0
  %909 = vmatprep.subr.mxu0 0.0
  %910 = vmatpush1.msra.mxu0 0.0
  %911 = vmatprep.subr.mxu0 0.0
  %912 = vmatpush1.msra.mxu0 0.0
  %913 = vmatprep.subr.mxu0 0.0
  %914 = vmatpush1.msra.mxu0 0.0
  %915 = vmatprep.subr.mxu0 0.0
  %916 = vmatpush1.msra.mxu0 0.0
  %917 = vmatprep.subr.mxu0 0.0
  %918 = vmatpush1.msra.mxu0 0.0
  %919 = vmatprep.subr.mxu0 0.0
  %920 = vmatpush1.msra.mxu0 0.0
  %921 = vmatprep.subr.mxu0 0.0
  %922 = vmatpush1.msra.mxu0 0.0
  %923 = vmatprep.subr.mxu0 0.0
  %924 = vmatpush1.msra.mxu0 0.0
  %925 = vmatprep.subr.mxu0 0.0
  %926 = vmatpush1.msra.mxu0 0.0
  %927 = vmatprep.subr.mxu0 0.0
  %928 = vmatpush1.msra.mxu0 0.0
  %929 = vmatprep.subr.mxu0 0.0
  %930 = vmatpush1.msra.mxu0 0.0
  %931 = vmatprep.subr.mxu0 0.0
  %932 = vmatpush1.msra.mxu0 0.0
  %933 = vmatprep.subr.mxu0 0.0
  %934 = vmatpush1.msra.mxu0 0.0
  %935 = vmatprep.subr.mxu0 0.0
  %936 = vmatpush1.msra.mxu0 0.0
  %937 = vmatprep.mubr.f32.mxu0 0.0
  %938 = vmatmul.mubr.f32.gmra.mrb[0].mxu0 %v871
  %v939 = vpop.f32.mrb[0].mxu0
  %v940 = vadd.f32 %v867, %v939
  %v941 = vpop.f32.mrb[0].mxu0
  %942 = vdwg.mxu0
  %v943 = vadd.f32 %v940, %v197
  %v944 = vtanh.pop %v943
  %s945 = scalar_lea.vmem %s5, 40
  %946 = vst [vmem:[%s945] sm:$0xff] %v944
  %s947 = scalar_lea.vmem %s0, 48
  %v948 = vld [vmem:[%s947] sm:$0xff]
  %949 = vmatprep.subr.mxu0 0.0
  %950 = vmatpush1.msra.mxu0 %v30
  %951 = vmatprep.subr.mxu0 0.0
  %952 = vmatpush1.msra.mxu0 %v31
  %953 = vmatprep.subr.mxu0 0.0
  %954 = vmatpush1.msra.mxu0 %v32
  %955 = vmatprep.subr.mxu0 0.0
  %956 = vmatpush1.msra.mxu0 %v33
  %957 = vmatprep.subr.mxu0 0.0
  %958 = vmatpush1.msra.mxu0 %v34
  %959 = vmatprep.subr.mxu0 0.0
  %960 = vmatpush1.msra.mxu0 %v35
  %961 = vmatprep.subr.mxu0 0.0
  %962 = vmatpush1.msra.mxu0 %v36
  %963 = vmatprep.subr.mxu0 0.0
  %964 = vmatpush1.msra.mxu0 %v37
  %965 = vmatprep.subr.mxu0 0.0
  %966 = vmatpush1.msra.mxu0 %v38
  %967 = vmatprep.subr.mxu0 0.0
  %968 = vmatpush1.msra.mxu0 %v39
  %969 = vmatprep.subr.mxu0 0.0
  %970 = vmatpush1.msra.mxu0 %v40
  %971 = vmatprep.subr.mxu0 0.0
  %972 = vmatpush1.msra.mxu0 %v41
  %973 = vmatprep.subr.mxu0 0.0
  %974 = vmatpush1.msra.mxu0 %v42
  %975 = vmatprep.subr.mxu0 0.0
  %976 = vmatpush1.msra.mxu0 %v43
  %977 = vmatprep.subr.mxu0 0.0
  %978 = vmatpush1.msra.mxu0 %v44
  %979 = vmatprep.subr.mxu0 0.0
  %980 = vmatpush1.msra.mxu0 %v45
  %981 = vmatprep.subr.mxu0 0.0
  %982 = vmatpush1.msra.mxu0 0.0
  %983 = vmatprep.subr.mxu0 0.0
  %984 = vmatpush1.msra.mxu0 0.0
  %985 = vmatprep.subr.mxu0 0.0
  %986 = vmatpush1.msra.mxu0 0.0
  %987 = vmatprep.subr.mxu0 0.0
  %988 = vmatpush1.msra.mxu0 0.0
  %989 = vmatprep.subr.mxu0 0.0
  %990 = vmatpush1.msra.mxu0 0.0
  %991 = vmatprep.subr.mxu0 0.0
  %992 = vmatpush1.msra.mxu0 0.0
  %993 = vmatprep.subr.mxu0 0.0
  %994 = vmatpush1.msra.mxu0 0.0
  %995 = vmatprep.subr.mxu0 0.0
  %996 = vmatpush1.msra.mxu0 0.0
  %997 = vmatprep.subr.mxu0 0.0
  %998 = vmatpush1.msra.mxu0 0.0
  %999 = vmatprep.subr.mxu0 0.0
  %1000 = vmatpush1.msra.mxu0 0.0
  %1001 = vmatprep.subr.mxu0 0.0
  %1002 = vmatpush1.msra.mxu0 0.0
  %1003 = vmatprep.subr.mxu0 0.0
  %1004 = vmatpush1.msra.mxu0 0.0
  %1005 = vmatprep.subr.mxu0 0.0
  %1006 = vmatpush1.msra.mxu0 0.0
  %1007 = vmatprep.subr.mxu0 0.0
  %1008 = vmatpush1.msra.mxu0 0.0
  %1009 = vmatprep.subr.mxu0 0.0
  %1010 = vmatpush1.msra.mxu0 0.0
  %1011 = vmatprep.subr.mxu0 0.0
  %1012 = vmatpush1.msra.mxu0 0.0
  %1013 = vmatprep.mubr.f32.mxu0 0.0
  %1014 = vmatmul.mubr.f32.gmra.mrb[0].mxu0 %v944
  %v1015 = vpop.f32.mrb[0].mxu0
  %v1016 = vadd.f32 0.0, %v1015
  %v1017 = vpop.f32.mrb[0].mxu0
  %1018 = vdwg.mxu0
  %v1020 = vsel %vm119, %v948, 0
  %1022 = vmatprep.subr.mxu0 0.0
  %1023 = vmatpush1.msra.mxu0 %v28
  %1024 = vmatprep.subr.mxu0 0.0
  %1025 = vmatpush1.msra.mxu0 %v29
  %1026 = vmatprep.subr.mxu0 0.0
  %1027 = vmatpush1.msra.mxu0 0.0
  %1028 = vmatprep.subr.mxu0 0.0
  %1029 = vmatpush1.msra.mxu0 0.0
  %1030 = vmatprep.subr.mxu0 0.0
  %1031 = vmatpush1.msra.mxu0 0.0
  %1032 = vmatprep.subr.mxu0 0.0
  %1033 = vmatpush1.msra.mxu0 0.0
  %1034 = vmatprep.subr.mxu0 0.0
  %1035 = vmatpush1.msra.mxu0 0.0
  %1036 = vmatprep.subr.mxu0 0.0
  %1037 = vmatpush1.msra.mxu0 0.0
  %1038 = vmatprep.subr.mxu0 0.0
  %1039 = vmatpush1.msra.mxu0 0.0
  %1040 = vmatprep.subr.mxu0 0.0
  %1041 = vmatpush1.msra.mxu0 0.0
  %1042 = vmatprep.subr.mxu0 0.0
  %1043 = vmatpush1.msra.mxu0 0.0
  %1044 = vmatprep.subr.mxu0 0.0
  %1045 = vmatpush1.msra.mxu0 0.0
  %1046 = vmatprep.subr.mxu0 0.0
  %1047 = vmatpush1.msra.mxu0 0.0
  %1048 = vmatprep.subr.mxu0 0.0
  %1049 = vmatpush1.msra.mxu0 0.0
  %1050 = vmatprep.subr.mxu0 0.0
  %1051 = vmatpush1.msra.mxu0 0.0
  %1052 = vmatprep.subr.mxu0 0.0
  %1053 = vmatpush1.msra.mxu0 0.0
  %1054 = vmatprep.subr.mxu0 0.0
  %1055 = vmatpush1.msra.mxu0 0.0
  %1056 = vmatprep.subr.mxu0 0.0
  %1057 = vmatpush1.msra.mxu0 0.0
  %1058 = vmatprep.subr.mxu0 0.0
  %1059 = vmatpush1.msra.mxu0 0.0
  %1060 = vmatprep.subr.mxu0 0.0
  %1061 = vmatpush1.msra.mxu0 0.0
  %1062 = vmatprep.subr.mxu0 0.0
  %1063 = vmatpush1.msra.mxu0 0.0
  %1064 = vmatprep.subr.mxu0 0.0
  %1065 = vmatpush1.msra.mxu0 0.0
  %1066 = vmatprep.subr.mxu0 0.0
  %1067 = vmatpush1.msra.mxu0 0.0
  %1068 = vmatprep.subr.mxu0 0.0
  %1069 = vmatpush1.msra.mxu0 0.0
  %1070 = vmatprep.subr.mxu0 0.0
  %1071 = vmatpush1.msra.mxu0 0.0
  %1072 = vmatprep.subr.mxu0 0.0
  %1073 = vmatpush1.msra.mxu0 0.0
  %1074 = vmatprep.subr.mxu0 0.0
  %1075 = vmatpush1.msra.mxu0 0.0
  %1076 = vmatprep.subr.mxu0 0.0
  %1077 = vmatpush1.msra.mxu0 0.0
  %1078 = vmatprep.subr.mxu0 0.0
  %1079 = vmatpush1.msra.mxu0 0.0
  %1080 = vmatprep.subr.mxu0 0.0
  %1081 = vmatpush1.msra.mxu0 0.0
  %1082 = vmatprep.subr.mxu0 0.0
  %1083 = vmatpush1.msra.mxu0 0.0
  %1084 = vmatprep.subr.mxu0 0.0
  %1085 = vmatpush1.msra.mxu0 0.0
  %1086 = vmatprep.mubr.f32.mxu0 0.0
  %1087 = vmatmul.mubr.f32.gmra.mrb[0].mxu0 %v1020
  %v1088 = vpop.f32.mrb[0].mxu0
  %v1089 = vadd.f32 %v1016, %v1088
  %v1090 = vpop.f32.mrb[0].mxu0
  %1091 = vdwg.mxu0
  %v1092 = vadd.f32 %v1089, %v197
  %v1093 = vtanh.pop %v1092
  %s1094 = scalar_lea.vmem %s5, 48
  %1095 = vst [vmem:[%s1094] sm:$0xff] %v1093
  %s1096 = scalar_lea.vmem %s0, 56
  %v1097 = vld [vmem:[%s1096] sm:$0xff]
  %1098 = vmatprep.subr.mxu0 0.0
  %1099 = vmatpush1.msra.mxu0 %v30
  %1100 = vmatprep.subr.mxu0 0.0
  %1101 = vmatpush1.msra.mxu0 %v31
  %1102 = vmatprep.subr.mxu0 0.0
  %1103 = vmatpush1.msra.mxu0 %v32
  %1104 = vmatprep.subr.mxu0 0.0
  %1105 = vmatpush1.msra.mxu0 %v33
  %1106 = vmatprep.subr.mxu0 0.0
  %1107 = vmatpush1.msra.mxu0 %v34
  %1108 = vmatprep.subr.mxu0 0.0
  %1109 = vmatpush1.msra.mxu0 %v35
  %1110 = vmatprep.subr.mxu0 0.0
  %1111 = vmatpush1.msra.mxu0 %v36
  %1112 = vmatprep.subr.mxu0 0.0
  %1113 = vmatpush1.msra.mxu0 %v37
  %1114 = vmatprep.subr.mxu0 0.0
  %1115 = vmatpush1.msra.mxu0 %v38
  %1116 = vmatprep.subr.mxu0 0.0
  %1117 = vmatpush1.msra.mxu0 %v39
  %1118 = vmatprep.subr.mxu0 0.0
  %1119 = vmatpush1.msra.mxu0 %v40
  %1120 = vmatprep.subr.mxu0 0.0
  %1121 = vmatpush1.msra.mxu0 %v41
  %1122 = vmatprep.subr.mxu0 0.0
  %1123 = vmatpush1.msra.mxu0 %v42
  %1124 = vmatprep.subr.mxu0 0.0
  %1125 = vmatpush1.msra.mxu0 %v43
  %1126 = vmatprep.subr.mxu0 0.0
  %1127 = vmatpush1.msra.mxu0 %v44
  %1128 = vmatprep.subr.mxu0 0.0
  %1129 = vmatpush1.msra.mxu0 %v45
  %1130 = vmatprep.subr.mxu0 0.0
  %1131 = vmatpush1.msra.mxu0 0.0
  %1132 = vmatprep.subr.mxu0 0.0
  %1133 = vmatpush1.msra.mxu0 0.0
  %1134 = vmatprep.subr.mxu0 0.0
  %1135 = vmatpush1.msra.mxu0 0.0
  %1136 = vmatprep.subr.mxu0 0.0
  %1137 = vmatpush1.msra.mxu0 0.0
  %1138 = vmatprep.subr.mxu0 0.0
  %1139 = vmatpush1.msra.mxu0 0.0
  %1140 = vmatprep.subr.mxu0 0.0
  %1141 = vmatpush1.msra.mxu0 0.0
  %1142 = vmatprep.subr.mxu0 0.0
  %1143 = vmatpush1.msra.mxu0 0.0
  %1144 = vmatprep.subr.mxu0 0.0
  %1145 = vmatpush1.msra.mxu0 0.0
  %1146 = vmatprep.subr.mxu0 0.0
  %1147 = vmatpush1.msra.mxu0 0.0
  %1148 = vmatprep.subr.mxu0 0.0
  %1149 = vmatpush1.msra.mxu0 0.0
  %1150 = vmatprep.subr.mxu0 0.0
  %1151 = vmatpush1.msra.mxu0 0.0
  %1152 = vmatprep.subr.mxu0 0.0
  %1153 = vmatpush1.msra.mxu0 0.0
  %1154 = vmatprep.subr.mxu0 0.0
  %1155 = vmatpush1.msra.mxu0 0.0
  %1156 = vmatprep.subr.mxu0 0.0
  %1157 = vmatpush1.msra.mxu0 0.0
  %1158 = vmatprep.subr.mxu0 0.0
  %1159 = vmatpush1.msra.mxu0 0.0
  %1160 = vmatprep.subr.mxu0 0.0
  %1161 = vmatpush1.msra.mxu0 0.0
  %1162 = vmatprep.mubr.f32.mxu0 0.0
  %1163 = vmatmul.mubr.f32.gmra.mrb[0].mxu0 %v1093
  %v1164 = vpop.f32.mrb[0].mxu0
  %v1165 = vadd.f32 0.0, %v1164
  %v1166 = vpop.f32.mrb[0].mxu0
  %1167 = vdwg.mxu0
  %v1169 = vsel %vm119, %v1097, 0
  %1171 = vmatprep.subr.mxu0 0.0
  %1172 = vmatpush1.msra.mxu0 %v28
  %1173 = vmatprep.subr.mxu0 0.0
  %1174 = vmatpush1.msra.mxu0 %v29
  %1175 = vmatprep.subr.mxu0 0.0
  %1176 = vmatpush1.msra.mxu0 0.0
  %1177 = vmatprep.subr.mxu0 0.0
  %1178 = vmatpush1.msra.mxu0 0.0
  %1179 = vmatprep.subr.mxu0 0.0
  %1180 = vmatpush1.msra.mxu0 0.0
  %1181 = vmatprep.subr.mxu0 0.0
  %1182 = vmatpush1.msra.mxu0 0.0
  %1183 = vmatprep.subr.mxu0 0.0
  %1184 = vmatpush1.msra.mxu0 0.0
  %1185 = vmatprep.subr.mxu0 0.0
  %1186 = vmatpush1.msra.mxu0 0.0
  %1187 = vmatprep.subr.mxu0 0.0
  %1188 = vmatpush1.msra.mxu0 0.0
  %1189 = vmatprep.subr.mxu0 0.0
  %1190 = vmatpush1.msra.mxu0 0.0
  %1191 = vmatprep.subr.mxu0 0.0
  %1192 = vmatpush1.msra.mxu0 0.0
  %1193 = vmatprep.subr.mxu0 0.0
  %1194 = vmatpush1.msra.mxu0 0.0
  %1195 = vmatprep.subr.mxu0 0.0
  %1196 = vmatpush1.msra.mxu0 0.0
  %1197 = vmatprep.subr.mxu0 0.0
  %1198 = vmatpush1.msra.mxu0 0.0
  %1199 = vmatprep.subr.mxu0 0.0
  %1200 = vmatpush1.msra.mxu0 0.0
  %1201 = vmatprep.subr.mxu0 0.0
  %1202 = vmatpush1.msra.mxu0 0.0
  %1203 = vmatprep.subr.mxu0 0.0
  %1204 = vmatpush1.msra.mxu0 0.0
  %1205 = vmatprep.subr.mxu0 0.0
  %1206 = vmatpush1.msra.mxu0 0.0
  %1207 = vmatprep.subr.mxu0 0.0
  %1208 = vmatpush1.msra.mxu0 0.0
  %1209 = vmatprep.subr.mxu0 0.0
  %1210 = vmatpush1.msra.mxu0 0.0
  %1211 = vmatprep.subr.mxu0 0.0
  %1212 = vmatpush1.msra.mxu0 0.0
  %1213 = vmatprep.subr.mxu0 0.0
  %1214 = vmatpush1.msra.mxu0 0.0
  %1215 = vmatprep.subr.mxu0 0.0
  %1216 = vmatpush1.msra.mxu0 0.0
  %1217 = vmatprep.subr.mxu0 0.0
  %1218 = vmatpush1.msra.mxu0 0.0
  %1219 = vmatprep.subr.mxu0 0.0
  %1220 = vmatpush1.msra.mxu0 0.0
  %1221 = vmatprep.subr.mxu0 0.0
  %1222 = vmatpush1.msra.mxu0 0.0
  %1223 = vmatprep.subr.mxu0 0.0
  %1224 = vmatpush1.msra.mxu0 0.0
  %1225 = vmatprep.subr.mxu0 0.0
  %1226 = vmatpush1.msra.mxu0 0.0
  %1227 = vmatprep.subr.mxu0 0.0
  %1228 = vmatpush1.msra.mxu0 0.0
  %1229 = vmatprep.subr.mxu0 0.0
  %1230 = vmatpush1.msra.mxu0 0.0
  %1231 = vmatprep.subr.mxu0 0.0
  %1232 = vmatpush1.msra.mxu0 0.0
  %1233 = vmatprep.subr.mxu0 0.0
  %1234 = vmatpush1.msra.mxu0 0.0
  %1235 = vmatprep.mubr.f32.mxu0 0.0
  %1236 = vmatmul.mubr.f32.gmra.mrb[0].mxu0 %v1169
  %v1237 = vpop.f32.mrb[0].mxu0
  %v1238 = vadd.f32 %v1165, %v1237
  %v1239 = vpop.f32.mrb[0].mxu0
  %1240 = vdwg.mxu0
  %v1241 = vadd.f32 %v1238, %v197
  %v1242 = vtanh.pop %v1241
  %s1243 = scalar_lea.vmem %s5, 56
  %1244 = vst [vmem:[%s1243] sm:$0xff] %v1242
  %1245 = vst [vmem:[#allocation2] sm:$0xff] %v1242
  %1246 = vst [vmem:[%s6] sm:$0xff] %v1242
  // Predicated region
  $region26: #{rnn_cell_forward.1} parent=0 // pred_check
    _
  $region27: #{rnn_cell_forward.1} parent=0 // pred_check_branch
    %1248 = sbr.rel (0) target = $region29
  $region28: #{rnn_cell_forward.1} parent=0 // pred_region
    _
  $region29: #{rnn_cell_forward.1} parent=0 // pred_fallthru
    _
  // Predicated region
  $region30: #{rnn_cell_forward.1} parent=0 // pred_check
    _
  $region31: #{rnn_cell_forward.1} parent=0 // pred_check_branch
    %1250 = sbr.rel (0) target = $region33
  $region32: #{rnn_cell_forward.1} parent=0 // pred_region
    _
  $region33: #{rnn_cell_forward.1} parent=0 // pred_fallthru
    _
  // Predicated region
  $region34: #{rnn_cell_forward.1} parent=0 // pred_check
    _
  $region35: #{rnn_cell_forward.1} parent=0 // pred_check_branch
    %1252 = sbr.rel (0) target = $region37
  $region36: #{rnn_cell_forward.1} parent=0 // pred_region
    _
  $region37: #{rnn_cell_forward.1} parent=0 // pred_fallthru
    _
  // Predicated region
  $region38: #{rnn_cell_forward.1} parent=0 // pred_check
    _
  $region39: #{rnn_cell_forward.1} parent=0 // pred_check_branch
    %1254 = sbr.rel (0) target = $region41
  $region40: #{rnn_cell_forward.1} parent=0 // pred_region
    _
  $region41: #{rnn_cell_forward.1} parent=0 // pred_fallthru
    _

</llo_original>
